<compile_context>
chip_gen: v7x
topology: tpu7x:2x2x1
jax: 0.10.0
libtpu: 0.0.40
codegen_flags: <defaults>
</compile_context>

<pallas_src>
import functools

import jax
import jax.numpy as jnp
from jax import lax
from jax.experimental import pallas as pl
from jax.experimental.pallas import tpu as pltpu


def _se_resnet_block_kernel(
    x_ref,      # (Nb, C, HW)   f32  activations: channels on sublanes, HW on lanes
    w1t_ref,    # (P, 9*C)      bf16 conv1 im2col weight, weights-on-left
    w2t_ref,    # (P, 9*P)      bf16 conv2 block-diagonal grouped weight
    masks_ref,  # (9, HW)       f32  SAME-padding edge masks, one row per tap
    misc_ref,   # (P, 8)        f32  packed per-channel vectors (bn scale/bias, se_b2)
    sw1b_ref,   # (P+1, Pr)     f32  SE fc1 weight with se_b1 appended as last row
    sw2t_ref,   # (P, Pr)       f32  SE fc2 weight (transposed)
    out_ref,    # (Nb, P, HW)   f32
    xbuf_ref,   # scratch (C, HW + 2*(W+1)) f32  zero-padded lane-shift buffer (conv1)
    p1_ref,     # scratch (9*C, HW)         bf16 im2col patch (conv1)
    ybuf_ref,   # scratch (P, HW + 2*(W+1)) f32  zero-padded lane-shift buffer (conv2)
    p2_ref,     # scratch (9*P, HW)         bf16 im2col patch (conv2)
    *, W,
):
    Nb, C, S = x_ref.shape
    P = out_ref.shape[1]
    Pr = sw2t_ref.shape[1]
    pad = W + 1

    # Packed per-channel columns -> (P, 1) lane-broadcast operands.
    bn1s = misc_ref[:, 0:1]
    bn1b = misc_ref[:, 1:2]
    bn2s = misc_ref[:, 2:3]
    bn2b = misc_ref[:, 3:4]
    se_b2 = misc_ref[:, 4:5]
    se_w1 = sw1b_ref[0:P, :]          # (P, Pr)
    se_b1 = sw1b_ref[P:P + 1, :]      # (1, Pr)

    # Dense zero of the two small shift buffers once per grid step; only their
    # interiors are rewritten below, so the end pads stay zero for every sample.
    xbuf_ref[...] = jnp.zeros_like(xbuf_ref)
    ybuf_ref[...] = jnp.zeros_like(ybuf_ref)

    # Flattened-spatial lane shift of each 3x3 tap (dy, dx in {-1, 0, 1}).
    shifts = [(i - 1) * W + (j - 1) for i in range(3) for j in range(3)]

    for n in range(Nb):               # small static loop (Nb is 1-2 per step)
        xn = x_ref[n]                                            # (C, S) f32
        xbuf_ref[:, pad:pad + S] = xn

        # ---- conv1 im2col: masked lane-shifted taps staged straight into the
        #      bf16 patch scratch (one store per tap, no concat / reshape chain).
        for t, off in enumerate(shifts):
            tap = xbuf_ref[:, pad + off:pad + off + S] * masks_ref[t:t + 1, :]
            p1_ref[t * C:(t + 1) * C, :] = tap.astype(jnp.bfloat16)
        acc1 = jnp.dot(w1t_ref[...], p1_ref[...],
                       preferred_element_type=jnp.float32)       # (P, S)
        y1 = jnp.maximum(acc1 * bn1s + bn1b, 0.0)                # bn1 + relu

        # ---- grouped conv2 as one matmul against the block-diagonal weight.
        ybuf_ref[:, pad:pad + S] = y1
        for t, off in enumerate(shifts):
            tap = ybuf_ref[:, pad + off:pad + off + S] * masks_ref[t:t + 1, :]
            p2_ref[t * P:(t + 1) * P, :] = tap.astype(jnp.bfloat16)
        acc2 = jnp.dot(w2t_ref[...], p2_ref[...],
                       preferred_element_type=jnp.float32)       # (P, S)
        y2 = jnp.maximum(acc2 * bn2s + bn2b, 0.0)                # bn2 + relu

        # ---- SE: global average pool -> fc1 -> relu -> fc2 -> sigmoid.
        #      Tiny, f32; done with broadcast-multiply + reductions (no skinny
        #      matmuls, no transposes).
        pooled = jnp.mean(y2, axis=1, keepdims=True)             # (P, 1)
        h = jnp.maximum(
            jnp.sum(se_w1 * pooled, axis=0, keepdims=True) + se_b1, 0.0)   # (1, Pr)
        z = jnp.sum(sw2t_ref[...] * h, axis=1, keepdims=True) + se_b2      # (P, 1)
        gate = 1.0 / (1.0 + jnp.exp(-z))

        # ---- channel gating + residual (downsample=None => C == P) + final relu;
        #      direct lane-dense (P, S) store.
        out_ref[n] = jnp.maximum(y2 * gate + xn, 0.0)


def se_resnet_block(x_nchw, params):
    """x_nchw: (N, C, H, W) float32 (PyTorch layout). Returns (N, P, H, W)."""
    N, C, H, W = x_nchw.shape
    P = params["bn1_scale"].shape[-1]
    G, Pg = params["w2"].shape[1], params["w2"].shape[2]
    Pr = params["se_w1"].shape[-1]
    HW = H * W
    assert C == P, "downsample=None requires inplanes == planes"

    # Free reshape only -- no wrapper transpose / pad of the activations.
    x2 = x_nchw.astype(jnp.float32).reshape(N, C, HW)

    # conv1 weight as a (P, 9*C) weights-on-left im2col matrix (bf16 operands).
    w1t = params["w1"].reshape(9 * C, P).T.astype(jnp.bfloat16)

    # Grouped conv2 expanded to a block-diagonal dense (P, 9*P) matrix.
    # NOTE: wastes (G-1)/G of conv2 MXU FLOPs; fine while overhead-bound at
    # small P, switch to per-group dots once Pg >= 128.
    w2_bd = jnp.zeros((9, P, P), jnp.float32)
    for g in range(G):
        w2_bd = w2_bd.at[:, g * Pg:(g + 1) * Pg, g * Pg:(g + 1) * Pg].set(
            params["w2"][:, g])
    w2t = w2_bd.reshape(9 * P, P).T.astype(jnp.bfloat16)

    # SAME-padding validity masks for the 9 flattened-spatial lane shifts.
    hh = jnp.arange(H)
    ww = jnp.arange(W)
    mask_rows = []
    for i in range(3):
        for j in range(3):
            mh = (hh + (i - 1) >= 0) & (hh + (i - 1) < H)
            mw = (ww + (j - 1) >= 0) & (ww + (j - 1) < W)
            mask_rows.append((mh[:, None] & mw[None, :]).reshape(HW))
    masks = jnp.stack(mask_rows, axis=0).astype(jnp.float32)          # (9, HW)

    # Pack the tiny per-channel vectors into a single (P, 8) tile / DMA.
    zeros_p = jnp.zeros((P,), jnp.float32)
    misc = jnp.stack(
        [params["bn1_scale"].reshape(-1), params["bn1_bias"].reshape(-1),
         params["bn2_scale"].reshape(-1), params["bn2_bias"].reshape(-1),
         params["se_b2"].reshape(-1), zeros_p, zeros_p, zeros_p], axis=1)  # (P, 8)

    # SE fc1 weight with its bias appended as the last row; fc2 transposed.
    sw1b = jnp.concatenate(
        [params["se_w1"], params["se_b1"].reshape(1, Pr)], axis=0)    # (P+1, Pr)
    sw2t = params["se_w2"].T.astype(jnp.float32)                      # (P, Pr)

    # Samples per grid step: keep the activation block small and the grid >= 2
    # (both v7x TensorCores get work); Nb must divide N.
    per_sample_bytes = (C + P) * HW * 4
    nb_cap = max(1, (2 * 1024 * 1024) // per_sample_bytes)
    limit = max(1, min(nb_cap, N // 2 if N >= 2 else 1))
    Nb = max(d for d in range(1, limit + 1) if N % d == 0)
    grid = (N // Nb,)

    # VMEM budget derived from the actual buffers (double-buffered activation
    # blocks + constant operands + single-copy scratch) with generous headroom;
    # stays well under v7x's 64 MiB for any Nb this formula can pick.
    Spad = HW + 2 * (W + 1)
    act_bytes = 2 * Nb * (C + P) * HW * 4
    const_bytes = 2 * (w1t.size * 2 + w2t.size * 2
                       + (masks.size + misc.size + sw1b.size + sw2t.size) * 4)
    scratch_bytes = (C + P) * Spad * 4 + 9 * (C + P) * HW * 2
    vmem_limit = int(min(112 * 2**20,
                         max(8 * 2**20,
                             4 * (act_bytes + const_bytes + scratch_bytes))))

    kernel = functools.partial(_se_resnet_block_kernel, W=W)

    def full_spec(a):
        return pl.BlockSpec(a.shape, lambda n: (0,) * a.ndim)

    flops = int(N * (2 * HW * 9 * C * P          # conv1
                     + 2 * HW * 9 * P * P        # conv2 (block-diagonal)
                     + 4 * P * Pr                # SE fcs
                     + 12 * HW * P))             # BN / relu / gate / residual
    bytes_accessed = int(4 * (x2.size + N * P * HW)
                         + 2 * (w1t.size + w2t.size)
                         + 4 * (masks.size + misc.size + sw1b.size + sw2t.size))

    out = pl.pallas_call(
        kernel,
        out_shape=jax.ShapeDtypeStruct((N, P, HW), jnp.float32),
        grid_spec=pltpu.PrefetchScalarGridSpec(
            num_scalar_prefetch=0,
            grid=grid,
            in_specs=[
                pl.BlockSpec((Nb, C, HW), lambda n: (n, 0, 0)),
                # Constant-index operands are only DMA'd once (their block
                # index never changes between grid steps).
                full_spec(w1t), full_spec(w2t), full_spec(masks),
                full_spec(misc), full_spec(sw1b), full_spec(sw2t),
            ],
            out_specs=pl.BlockSpec((Nb, P, HW), lambda n: (n, 0, 0)),
            scratch_shapes=[
                pltpu.VMEM((C, Spad), jnp.float32),        # conv1 shift buffer
                pltpu.VMEM((9 * C, HW), jnp.bfloat16),     # conv1 im2col patch
                pltpu.VMEM((P, Spad), jnp.float32),        # conv2 shift buffer
                pltpu.VMEM((9 * P, HW), jnp.bfloat16),     # conv2 im2col patch
            ],
        ),
        compiler_params=pltpu.CompilerParams(
            dimension_semantics=("parallel",),
            vmem_limit_bytes=vmem_limit,
        ),
        cost_estimate=pl.CostEstimate(
            flops=flops, transcendentals=int(N * P), bytes_accessed=bytes_accessed),
    )(x2, w1t, w2t, masks, misc, sw1b, sw2t)

    return out.reshape(N, P, H, W)   # free: output already channels-first / row-major


def init_params(key, inplanes, planes, groups, reduction):
    C, P, G = inplanes, planes, groups
    Pg, Pr = P // G, P // reduction
    eps = 1e-5
    ks = jax.random.split(key, 16)

    def fold_bn(gamma, beta, mean, var):
        s = gamma / jnp.sqrt(var + eps)
        return s, beta - mean * s

    w1 = 0.2 * jax.random.normal(ks[0], (9, C, P), jnp.float32)
    w2 = 0.2 * jax.random.normal(ks[1], (9, G, Pg, Pg), jnp.float32)

    g1 = 1.0 + 0.1 * jax.random.normal(ks[2], (P,), jnp.float32)
    b1 = 0.1 * jax.random.normal(ks[3], (P,), jnp.float32)
    m1 = 0.1 * jax.random.normal(ks[4], (P,), jnp.float32)
    v1 = jax.random.uniform(ks[5], (P,), jnp.float32, 0.5, 1.5)
    bn1_scale, bn1_bias = fold_bn(g1, b1, m1, v1)

    g2 = 1.0 + 0.1 * jax.random.normal(ks[6], (P,), jnp.float32)
    b2 = 0.1 * jax.random.normal(ks[7], (P,), jnp.float32)
    m2 = 0.1 * jax.random.normal(ks[8], (P,), jnp.float32)
    v2 = jax.random.uniform(ks[9], (P,), jnp.float32, 0.5, 1.5)
    bn2_scale, bn2_bias = fold_bn(g2, b2, m2, v2)

    se_w1 = 0.3 * jax.random.normal(ks[10], (P, Pr), jnp.float32)
    se_b1 = 0.1 * jax.random.normal(ks[11], (Pr,), jnp.float32)
    se_w2 = 0.3 * jax.random.normal(ks[12], (Pr, P), jnp.float32)
    se_b2 = 0.1 * jax.random.normal(ks[13], (P,), jnp.float32)

    return dict(w1=w1, bn1_scale=bn1_scale, bn1_bias=bn1_bias,
                w2=w2, bn2_scale=bn2_scale, bn2_bias=bn2_bias,
                se_w1=se_w1, se_b1=se_b1, se_w2=se_w2, se_b2=se_b2)


def se_resnet_block_ref(x_nchw, params):
    """Pure-JAX reference (lax conv) with matching bf16 operands / f32 accumulation."""
    x = jnp.transpose(x_nchw, (0, 2, 3, 1)).astype(jnp.float32)   # NHWC
    N, H, W, C = x.shape
    P = params["w1"].shape[-1]
    G, Pg = params["w2"].shape[1], params["w2"].shape[2]
    dn = ("NHWC", "HWIO", "NHWC")

    w1 = params["w1"].reshape(3, 3, C, P).astype(jnp.bfloat16)
    y = lax.conv_general_dilated(x.astype(jnp.bfloat16), w1, (1, 1), "SAME",
                                 dimension_numbers=dn,
                                 preferred_element_type=jnp.float32)
    y = jnp.maximum(y * params["bn1_scale"] + params["bn1_bias"], 0.0)

    w2 = (params["w2"].reshape(3, 3, G, Pg, Pg)
          .transpose(0, 1, 3, 2, 4).reshape(3, 3, Pg, P)).astype(jnp.bfloat16)
    y = lax.conv_general_dilated(y.astype(jnp.bfloat16), w2, (1, 1), "SAME",
                                 dimension_numbers=dn, feature_group_count=G,
                                 preferred_element_type=jnp.float32)
    y = jnp.maximum(y * params["bn2_scale"] + params["bn2_bias"], 0.0)

    pooled = y.mean(axis=(1, 2))                                   # (N, P)
    h = jnp.maximum(pooled @ params["se_w1"] + params["se_b1"], 0.0)
    gate = 1.0 / (1.0 + jnp.exp(-(h @ params["se_w2"] + params["se_b2"])))

    out = jnp.maximum(y * gate[:, None, None, :] + x, 0.0)
    return jnp.transpose(out, (0, 3, 1, 2))


if __name__ == "__main__":
    key = jax.random.PRNGKey(0)

    # (inplanes, planes, groups, reduction, N, H, W)
    configs = [
        (8, 8, 2, 2, 2, 16, 16),     # SEResNetBlock(8, 8, groups=2, reduction=2)
        (16, 16, 4, 4, 4, 16, 16),   # wider variant: exercises Nb=2 per grid step
    ]
    for idx, (inplanes, planes, groups, reduction, N, H, W) in enumerate(configs):
        kx, kp, key = jax.random.split(key, 3)
        x = jax.random.normal(kx, (N, inplanes, H, W), jnp.float32)
        params = init_params(kp, inplanes, planes, groups, reduction)

        out = jax.block_until_ready(se_resnet_block(x, params))
        ref = jax.block_until_ready(se_resnet_block_ref(x, params))

        assert out.shape == (N, planes, H, W), out.shape
        err = float(jnp.max(jnp.abs(out - ref)))
        # Kernel and reference both use bf16 matmul operands with f32
        # accumulation; remaining differences are f32 accumulation order only.
        assert err < 2e-2, f"config {idx}: kernel/reference mismatch, max |err| = {err}"

    print("KERNEL_OK")
</pallas_src>

<mosaic_0001>
module attributes {stable_mosaic.version = 11 : i64} {
  func.func @_se_resnet_block_kernel(%arg0: i32, %arg1: memref<1x8x256xf32, #tpu.memory_space<vmem>>, %arg2: memref<8x72xbf16, #tpu.memory_space<vmem>>, %arg3: memref<8x72xbf16, #tpu.memory_space<vmem>>, %arg4: memref<9x256xf32, #tpu.memory_space<vmem>>, %arg5: memref<8x8xf32, #tpu.memory_space<vmem>>, %arg6: memref<9x4xf32, #tpu.memory_space<vmem>>, %arg7: memref<8x4xf32, #tpu.memory_space<vmem>>, %arg8: memref<1x8x256xf32, #tpu.memory_space<vmem>>, %arg9: memref<8x290xf32, #tpu.memory_space<vmem>>, %arg10: memref<72x256xbf16, #tpu.memory_space<vmem>>, %arg11: memref<8x290xf32, #tpu.memory_space<vmem>>, %arg12: memref<72x256xbf16, #tpu.memory_space<vmem>>) attributes {dimension_semantics = [#tpu.dimension_semantics<parallel>], iteration_bounds = array<i64: 2>, scalar_prefetch = 0 : i64, scratch_operands = 4 : i64, tpu.core_type = #tpu.core_type<tc>, window_params = [{transform_indices = @transform_0, window_bounds = array<i64: 1, 8, 256>}, {pipeline_mode = #tpu.pipeline_mode<synchronous>, transform_indices = @transform_1, window_bounds = array<i64: 8, 72>}, {pipeline_mode = #tpu.pipeline_mode<synchronous>, transform_indices = @transform_2, window_bounds = array<i64: 8, 72>}, {pipeline_mode = #tpu.pipeline_mode<synchronous>, transform_indices = @transform_3, window_bounds = array<i64: 9, 256>}, {pipeline_mode = #tpu.pipeline_mode<synchronous>, transform_indices = @transform_4, window_bounds = array<i64: 8, 8>}, {pipeline_mode = #tpu.pipeline_mode<synchronous>, transform_indices = @transform_5, window_bounds = array<i64: 9, 4>}, {pipeline_mode = #tpu.pipeline_mode<synchronous>, transform_indices = @transform_6, window_bounds = array<i64: 8, 4>}, {transform_indices = @transform_7, window_bounds = array<i64: 1, 8, 256>}]} {
    %c0 = arith.constant 0 : index
    %c0_0 = arith.constant 0 : index
    %0 = vector.load %arg5[%c0, %c0_0] : memref<8x8xf32, #tpu.memory_space<vmem>>, vector<8x1xf32>
    %c0_1 = arith.constant 0 : index
    %c1 = arith.constant 1 : index
    %1 = vector.load %arg5[%c0_1, %c1] : memref<8x8xf32, #tpu.memory_space<vmem>>, vector<8x1xf32>
    %c0_2 = arith.constant 0 : index
    %c2 = arith.constant 2 : index
    %2 = vector.load %arg5[%c0_2, %c2] : memref<8x8xf32, #tpu.memory_space<vmem>>, vector<8x1xf32>
    %c0_3 = arith.constant 0 : index
    %c3 = arith.constant 3 : index
    %3 = vector.load %arg5[%c0_3, %c3] : memref<8x8xf32, #tpu.memory_space<vmem>>, vector<8x1xf32>
    %c0_4 = arith.constant 0 : index
    %c4 = arith.constant 4 : index
    %4 = vector.load %arg5[%c0_4, %c4] : memref<8x8xf32, #tpu.memory_space<vmem>>, vector<8x1xf32>
    %c0_5 = arith.constant 0 : index
    %c0_6 = arith.constant 0 : index
    %5 = vector.load %arg6[%c0_5, %c0_6] : memref<9x4xf32, #tpu.memory_space<vmem>>, vector<8x4xf32>
    %c8 = arith.constant 8 : index
    %c0_7 = arith.constant 0 : index
    %6 = vector.load %arg6[%c8, %c0_7] : memref<9x4xf32, #tpu.memory_space<vmem>>, vector<1x4xf32>
    %cst = arith.constant 0.000000e+00 : f32
    %7 = vector.broadcast %cst : f32 to vector<8x290xf32>
    %c0_8 = arith.constant 0 : index
    %c0_9 = arith.constant 0 : index
    %8 = vector.load %arg9[%c0_8, %c0_9] : memref<8x290xf32, #tpu.memory_space<vmem>>, vector<8x290xf32>
    tpu.vector_store %arg9[%c0_8, %c0_9], %7 {strides = array<i32>} : memref<8x290xf32, #tpu.memory_space<vmem>>, vector<8x290xf32>,
    %cst_10 = arith.constant 0.000000e+00 : f32
    %9 = vector.broadcast %cst_10 : f32 to vector<8x290xf32>
    %c0_11 = arith.constant 0 : index
    %c0_12 = arith.constant 0 : index
    %10 = vector.load %arg11[%c0_11, %c0_12] : memref<8x290xf32, #tpu.memory_space<vmem>>, vector<8x290xf32>
    tpu.vector_store %arg11[%c0_11, %c0_12], %9 {strides = array<i32>} : memref<8x290xf32, #tpu.memory_space<vmem>>, vector<8x290xf32>,
    %c0_13 = arith.constant 0 : index
    %c0_14 = arith.constant 0 : index
    %c0_15 = arith.constant 0 : index
    %11 = vector.load %arg1[%c0_13, %c0_14, %c0_15] : memref<1x8x256xf32, #tpu.memory_space<vmem>>, vector<1x8x256xf32>
    %12 = vector.shape_cast %11 : vector<1x8x256xf32> to vector<8x256xf32>
    %c0_16 = arith.constant 0 : index
    %c17 = arith.constant 17 : index
    %13 = vector.load %arg9[%c0_16, %c17] : memref<8x290xf32, #tpu.memory_space<vmem>>, vector<8x256xf32>
    tpu.vector_store %arg9[%c0_16, %c17], %12 {strides = array<i32>} : memref<8x290xf32, #tpu.memory_space<vmem>>, vector<8x256xf32>,
    %c0_17 = arith.constant 0 : index
    %c0_18 = arith.constant 0 : index
    %14 = vector.load %arg9[%c0_17, %c0_18] : memref<8x290xf32, #tpu.memory_space<vmem>>, vector<8x256xf32>
    %c0_19 = arith.constant 0 : index
    %c0_20 = arith.constant 0 : index
    %15 = vector.load %arg4[%c0_19, %c0_20] : memref<9x256xf32, #tpu.memory_space<vmem>>, vector<1x256xf32>
    %16 = vector.broadcast %15 : vector<1x256xf32> to vector<8x256xf32>
    %17 = arith.mulf %14, %16 : vector<8x256xf32>
    %18 = arith.truncf %17 : vector<8x256xf32> to vector<8x256xbf16>
    %c0_21 = arith.constant 0 : index
    %c0_22 = arith.constant 0 : index
    %19 = vector.load %arg10[%c0_21, %c0_22] : memref<72x256xbf16, #tpu.memory_space<vmem>>, vector<8x256xbf16>
    tpu.vector_store %arg10[%c0_21, %c0_22], %18 {strides = array<i32>} : memref<72x256xbf16, #tpu.memory_space<vmem>>, vector<8x256xbf16>,
    %c0_23 = arith.constant 0 : index
    %c1_24 = arith.constant 1 : index
    %20 = vector.load %arg9[%c0_23, %c1_24] : memref<8x290xf32, #tpu.memory_space<vmem>>, vector<8x256xf32>
    %c1_25 = arith.constant 1 : index
    %c0_26 = arith.constant 0 : index
    %21 = vector.load %arg4[%c1_25, %c0_26] : memref<9x256xf32, #tpu.memory_space<vmem>>, vector<1x256xf32>
    %22 = vector.broadcast %21 : vector<1x256xf32> to vector<8x256xf32>
    %23 = arith.mulf %20, %22 : vector<8x256xf32>
    %24 = arith.truncf %23 : vector<8x256xf32> to vector<8x256xbf16>
    %c8_27 = arith.constant 8 : index
    %c0_28 = arith.constant 0 : index
    %25 = vector.load %arg10[%c8_27, %c0_28] : memref<72x256xbf16, #tpu.memory_space<vmem>>, vector<8x256xbf16>
    tpu.vector_store %arg10[%c8_27, %c0_28], %24 {strides = array<i32>} : memref<72x256xbf16, #tpu.memory_space<vmem>>, vector<8x256xbf16>,
    %c0_29 = arith.constant 0 : index
    %c2_30 = arith.constant 2 : index
    %26 = vector.load %arg9[%c0_29, %c2_30] : memref<8x290xf32, #tpu.memory_space<vmem>>, vector<8x256xf32>
    %c2_31 = arith.constant 2 : index
    %c0_32 = arith.constant 0 : index
    %27 = vector.load %arg4[%c2_31, %c0_32] : memref<9x256xf32, #tpu.memory_space<vmem>>, vector<1x256xf32>
    %28 = vector.broadcast %27 : vector<1x256xf32> to vector<8x256xf32>
    %29 = arith.mulf %26, %28 : vector<8x256xf32>
    %30 = arith.truncf %29 : vector<8x256xf32> to vector<8x256xbf16>
    %c16 = arith.constant 16 : index
    %c0_33 = arith.constant 0 : index
    %31 = vector.load %arg10[%c16, %c0_33] : memref<72x256xbf16, #tpu.memory_space<vmem>>, vector<8x256xbf16>
    tpu.vector_store %arg10[%c16, %c0_33], %30 {strides = array<i32>} : memref<72x256xbf16, #tpu.memory_space<vmem>>, vector<8x256xbf16>,
    %c0_34 = arith.constant 0 : index
    %c16_35 = arith.constant 16 : index
    %32 = vector.load %arg9[%c0_34, %c16_35] : memref<8x290xf32, #tpu.memory_space<vmem>>, vector<8x256xf32>
    %c3_36 = arith.constant 3 : index
    %c0_37 = arith.constant 0 : index
    %33 = vector.load %arg4[%c3_36, %c0_37] : memref<9x256xf32, #tpu.memory_space<vmem>>, vector<1x256xf32>
    %34 = vector.broadcast %33 : vector<1x256xf32> to vector<8x256xf32>
    %35 = arith.mulf %32, %34 : vector<8x256xf32>
    %36 = arith.truncf %35 : vector<8x256xf32> to vector<8x256xbf16>
    %c24 = arith.constant 24 : index
    %c0_38 = arith.constant 0 : index
    %37 = vector.load %arg10[%c24, %c0_38] : memref<72x256xbf16, #tpu.memory_space<vmem>>, vector<8x256xbf16>
    tpu.vector_store %arg10[%c24, %c0_38], %36 {strides = array<i32>} : memref<72x256xbf16, #tpu.memory_space<vmem>>, vector<8x256xbf16>,
    %c0_39 = arith.constant 0 : index
    %c17_40 = arith.constant 17 : index
    %38 = vector.load %arg9[%c0_39, %c17_40] : memref<8x290xf32, #tpu.memory_space<vmem>>, vector<8x256xf32>
    %c4_41 = arith.constant 4 : index
    %c0_42 = arith.constant 0 : index
    %39 = vector.load %arg4[%c4_41, %c0_42] : memref<9x256xf32, #tpu.memory_space<vmem>>, vector<1x256xf32>
    %40 = vector.broadcast %39 : vector<1x256xf32> to vector<8x256xf32>
    %41 = arith.mulf %38, %40 : vector<8x256xf32>
    %42 = arith.truncf %41 : vector<8x256xf32> to vector<8x256xbf16>
    %c32 = arith.constant 32 : index
    %c0_43 = arith.constant 0 : index
    %43 = vector.load %arg10[%c32, %c0_43] : memref<72x256xbf16, #tpu.memory_space<vmem>>, vector<8x256xbf16>
    tpu.vector_store %arg10[%c32, %c0_43], %42 {strides = array<i32>} : memref<72x256xbf16, #tpu.memory_space<vmem>>, vector<8x256xbf16>,
    %c0_44 = arith.constant 0 : index
    %c18 = arith.constant 18 : index
    %44 = vector.load %arg9[%c0_44, %c18] : memref<8x290xf32, #tpu.memory_space<vmem>>, vector<8x256xf32>
    %c5 = arith.constant 5 : index
    %c0_45 = arith.constant 0 : index
    %45 = vector.load %arg4[%c5, %c0_45] : memref<9x256xf32, #tpu.memory_space<vmem>>, vector<1x256xf32>
    %46 = vector.broadcast %45 : vector<1x256xf32> to vector<8x256xf32>
    %47 = arith.mulf %44, %46 : vector<8x256xf32>
    %48 = arith.truncf %47 : vector<8x256xf32> to vector<8x256xbf16>
    %c40 = arith.constant 40 : index
    %c0_46 = arith.constant 0 : index
    %49 = vector.load %arg10[%c40, %c0_46] : memref<72x256xbf16, #tpu.memory_space<vmem>>, vector<8x256xbf16>
    tpu.vector_store %arg10[%c40, %c0_46], %48 {strides = array<i32>} : memref<72x256xbf16, #tpu.memory_space<vmem>>, vector<8x256xbf16>,
    %c0_47 = arith.constant 0 : index
    %c32_48 = arith.constant 32 : index
    %50 = vector.load %arg9[%c0_47, %c32_48] : memref<8x290xf32, #tpu.memory_space<vmem>>, vector<8x256xf32>
    %c6 = arith.constant 6 : index
    %c0_49 = arith.constant 0 : index
    %51 = vector.load %arg4[%c6, %c0_49] : memref<9x256xf32, #tpu.memory_space<vmem>>, vector<1x256xf32>
    %52 = vector.broadcast %51 : vector<1x256xf32> to vector<8x256xf32>
    %53 = arith.mulf %50, %52 : vector<8x256xf32>
    %54 = arith.truncf %53 : vector<8x256xf32> to vector<8x256xbf16>
    %c48 = arith.constant 48 : index
    %c0_50 = arith.constant 0 : index
    %55 = vector.load %arg10[%c48, %c0_50] : memref<72x256xbf16, #tpu.memory_space<vmem>>, vector<8x256xbf16>
    tpu.vector_store %arg10[%c48, %c0_50], %54 {strides = array<i32>} : memref<72x256xbf16, #tpu.memory_space<vmem>>, vector<8x256xbf16>,
    %c0_51 = arith.constant 0 : index
    %c33 = arith.constant 33 : index
    %56 = vector.load %arg9[%c0_51, %c33] : memref<8x290xf32, #tpu.memory_space<vmem>>, vector<8x256xf32>
    %c7 = arith.constant 7 : index
    %c0_52 = arith.constant 0 : index
    %57 = vector.load %arg4[%c7, %c0_52] : memref<9x256xf32, #tpu.memory_space<vmem>>, vector<1x256xf32>
    %58 = vector.broadcast %57 : vector<1x256xf32> to vector<8x256xf32>
    %59 = arith.mulf %56, %58 : vector<8x256xf32>
    %60 = arith.truncf %59 : vector<8x256xf32> to vector<8x256xbf16>
    %c56 = arith.constant 56 : index
    %c0_53 = arith.constant 0 : index
    %61 = vector.load %arg10[%c56, %c0_53] : memref<72x256xbf16, #tpu.memory_space<vmem>>, vector<8x256xbf16>
    tpu.vector_store %arg10[%c56, %c0_53], %60 {strides = array<i32>} : memref<72x256xbf16, #tpu.memory_space<vmem>>, vector<8x256xbf16>,
    %c0_54 = arith.constant 0 : index
    %c34 = arith.constant 34 : index
    %62 = vector.load %arg9[%c0_54, %c34] : memref<8x290xf32, #tpu.memory_space<vmem>>, vector<8x256xf32>
    %c8_55 = arith.constant 8 : index
    %c0_56 = arith.constant 0 : index
    %63 = vector.load %arg4[%c8_55, %c0_56] : memref<9x256xf32, #tpu.memory_space<vmem>>, vector<1x256xf32>
    %64 = vector.broadcast %63 : vector<1x256xf32> to vector<8x256xf32>
    %65 = arith.mulf %62, %64 : vector<8x256xf32>
    %66 = arith.truncf %65 : vector<8x256xf32> to vector<8x256xbf16>
    %c64 = arith.constant 64 : index
    %c0_57 = arith.constant 0 : index
    %67 = vector.load %arg10[%c64, %c0_57] : memref<72x256xbf16, #tpu.memory_space<vmem>>, vector<8x256xbf16>
    tpu.vector_store %arg10[%c64, %c0_57], %66 {strides = array<i32>} : memref<72x256xbf16, #tpu.memory_space<vmem>>, vector<8x256xbf16>,
    %c0_58 = arith.constant 0 : index
    %c0_59 = arith.constant 0 : index
    %68 = vector.load %arg2[%c0_58, %c0_59] : memref<8x72xbf16, #tpu.memory_space<vmem>>, vector<8x72xbf16>
    %c0_60 = arith.constant 0 : index
    %c0_61 = arith.constant 0 : index
    %69 = vector.load %arg10[%c0_60, %c0_61] : memref<72x256xbf16, #tpu.memory_space<vmem>>, vector<72x256xbf16>
    %cst_62 = arith.constant dense<0.000000e+00> : vector<8x256xf32>
    %70 = tpu.matmul %68, %69, %cst_62 {dimension_numbers = #tpu.dot_dimension_numbers<[1], [0], [0], [1], [0, 0, 1, 1], [], []>} : vector<8x72xbf16>, vector<72x256xbf16>, vector<8x256xf32> -> vector<8x256xf32>
    %71 = vector.broadcast %0 : vector<8x1xf32> to vector<8x256xf32>
    %72 = arith.mulf %70, %71 : vector<8x256xf32>
    %73 = vector.broadcast %1 : vector<8x1xf32> to vector<8x256xf32>
    %74 = arith.addf %72, %73 : vector<8x256xf32>
    %cst_63 = arith.constant 0.000000e+00 : f32
    %75 = vector.broadcast %cst_63 : f32 to vector<8x256xf32>
    %76 = arith.maximumf %74, %75 : vector<8x256xf32>
    %c0_64 = arith.constant 0 : index
    %c17_65 = arith.constant 17 : index
    %77 = vector.load %arg11[%c0_64, %c17_65] : memref<8x290xf32, #tpu.memory_space<vmem>>, vector<8x256xf32>
    tpu.vector_store %arg11[%c0_64, %c17_65], %76 {strides = array<i32>} : memref<8x290xf32, #tpu.memory_space<vmem>>, vector<8x256xf32>,
    %c0_66 = arith.constant 0 : index
    %c0_67 = arith.constant 0 : index
    %78 = vector.load %arg11[%c0_66, %c0_67] : memref<8x290xf32, #tpu.memory_space<vmem>>, vector<8x256xf32>
    %c0_68 = arith.constant 0 : index
    %c0_69 = arith.constant 0 : index
    %79 = vector.load %arg4[%c0_68, %c0_69] : memref<9x256xf32, #tpu.memory_space<vmem>>, vector<1x256xf32>
    %80 = vector.broadcast %79 : vector<1x256xf32> to vector<8x256xf32>
    %81 = arith.mulf %78, %80 : vector<8x256xf32>
    %82 = arith.truncf %81 : vector<8x256xf32> to vector<8x256xbf16>
    %c0_70 = arith.constant 0 : index
    %c0_71 = arith.constant 0 : index
    %83 = vector.load %arg12[%c0_70, %c0_71] : memref<72x256xbf16, #tpu.memory_space<vmem>>, vector<8x256xbf16>
    tpu.vector_store %arg12[%c0_70, %c0_71], %82 {strides = array<i32>} : memref<72x256xbf16, #tpu.memory_space<vmem>>, vector<8x256xbf16>,
    %c0_72 = arith.constant 0 : index
    %c1_73 = arith.constant 1 : index
    %84 = vector.load %arg11[%c0_72, %c1_73] : memref<8x290xf32, #tpu.memory_space<vmem>>, vector<8x256xf32>
    %c1_74 = arith.constant 1 : index
    %c0_75 = arith.constant 0 : index
    %85 = vector.load %arg4[%c1_74, %c0_75] : memref<9x256xf32, #tpu.memory_space<vmem>>, vector<1x256xf32>
    %86 = vector.broadcast %85 : vector<1x256xf32> to vector<8x256xf32>
    %87 = arith.mulf %84, %86 : vector<8x256xf32>
    %88 = arith.truncf %87 : vector<8x256xf32> to vector<8x256xbf16>
    %c8_76 = arith.constant 8 : index
    %c0_77 = arith.constant 0 : index
    %89 = vector.load %arg12[%c8_76, %c0_77] : memref<72x256xbf16, #tpu.memory_space<vmem>>, vector<8x256xbf16>
    tpu.vector_store %arg12[%c8_76, %c0_77], %88 {strides = array<i32>} : memref<72x256xbf16, #tpu.memory_space<vmem>>, vector<8x256xbf16>,
    %c0_78 = arith.constant 0 : index
    %c2_79 = arith.constant 2 : index
    %90 = vector.load %arg11[%c0_78, %c2_79] : memref<8x290xf32, #tpu.memory_space<vmem>>, vector<8x256xf32>
    %c2_80 = arith.constant 2 : index
    %c0_81 = arith.constant 0 : index
    %91 = vector.load %arg4[%c2_80, %c0_81] : memref<9x256xf32, #tpu.memory_space<vmem>>, vector<1x256xf32>
    %92 = vector.broadcast %91 : vector<1x256xf32> to vector<8x256xf32>
    %93 = arith.mulf %90, %92 : vector<8x256xf32>
    %94 = arith.truncf %93 : vector<8x256xf32> to vector<8x256xbf16>
    %c16_82 = arith.constant 16 : index
    %c0_83 = arith.constant 0 : index
    %95 = vector.load %arg12[%c16_82, %c0_83] : memref<72x256xbf16, #tpu.memory_space<vmem>>, vector<8x256xbf16>
    tpu.vector_store %arg12[%c16_82, %c0_83], %94 {strides = array<i32>} : memref<72x256xbf16, #tpu.memory_space<vmem>>, vector<8x256xbf16>,
    %c0_84 = arith.constant 0 : index
    %c16_85 = arith.constant 16 : index
    %96 = vector.load %arg11[%c0_84, %c16_85] : memref<8x290xf32, #tpu.memory_space<vmem>>, vector<8x256xf32>
    %c3_86 = arith.constant 3 : index
    %c0_87 = arith.constant 0 : index
    %97 = vector.load %arg4[%c3_86, %c0_87] : memref<9x256xf32, #tpu.memory_space<vmem>>, vector<1x256xf32>
    %98 = vector.broadcast %97 : vector<1x256xf32> to vector<8x256xf32>
    %99 = arith.mulf %96, %98 : vector<8x256xf32>
    %100 = arith.truncf %99 : vector<8x256xf32> to vector<8x256xbf16>
    %c24_88 = arith.constant 24 : index
    %c0_89 = arith.constant 0 : index
    %101 = vector.load %arg12[%c24_88, %c0_89] : memref<72x256xbf16, #tpu.memory_space<vmem>>, vector<8x256xbf16>
    tpu.vector_store %arg12[%c24_88, %c0_89], %100 {strides = array<i32>} : memref<72x256xbf16, #tpu.memory_space<vmem>>, vector<8x256xbf16>,
    %c0_90 = arith.constant 0 : index
    %c17_91 = arith.constant 17 : index
    %102 = vector.load %arg11[%c0_90, %c17_91] : memref<8x290xf32, #tpu.memory_space<vmem>>, vector<8x256xf32>
    %c4_92 = arith.constant 4 : index
    %c0_93 = arith.constant 0 : index
    %103 = vector.load %arg4[%c4_92, %c0_93] : memref<9x256xf32, #tpu.memory_space<vmem>>, vector<1x256xf32>
    %104 = vector.broadcast %103 : vector<1x256xf32> to vector<8x256xf32>
    %105 = arith.mulf %102, %104 : vector<8x256xf32>
    %106 = arith.truncf %105 : vector<8x256xf32> to vector<8x256xbf16>
    %c32_94 = arith.constant 32 : index
    %c0_95 = arith.constant 0 : index
    %107 = vector.load %arg12[%c32_94, %c0_95] : memref<72x256xbf16, #tpu.memory_space<vmem>>, vector<8x256xbf16>
    tpu.vector_store %arg12[%c32_94, %c0_95], %106 {strides = array<i32>} : memref<72x256xbf16, #tpu.memory_space<vmem>>, vector<8x256xbf16>,
    %c0_96 = arith.constant 0 : index
    %c18_97 = arith.constant 18 : index
    %108 = vector.load %arg11[%c0_96, %c18_97] : memref<8x290xf32, #tpu.memory_space<vmem>>, vector<8x256xf32>
    %c5_98 = arith.constant 5 : index
    %c0_99 = arith.constant 0 : index
    %109 = vector.load %arg4[%c5_98, %c0_99] : memref<9x256xf32, #tpu.memory_space<vmem>>, vector<1x256xf32>
    %110 = vector.broadcast %109 : vector<1x256xf32> to vector<8x256xf32>
    %111 = arith.mulf %108, %110 : vector<8x256xf32>
    %112 = arith.truncf %111 : vector<8x256xf32> to vector<8x256xbf16>
    %c40_100 = arith.constant 40 : index
    %c0_101 = arith.constant 0 : index
    %113 = vector.load %arg12[%c40_100, %c0_101] : memref<72x256xbf16, #tpu.memory_space<vmem>>, vector<8x256xbf16>
    tpu.vector_store %arg12[%c40_100, %c0_101], %112 {strides = array<i32>} : memref<72x256xbf16, #tpu.memory_space<vmem>>, vector<8x256xbf16>,
    %c0_102 = arith.constant 0 : index
    %c32_103 = arith.constant 32 : index
    %114 = vector.load %arg11[%c0_102, %c32_103] : memref<8x290xf32, #tpu.memory_space<vmem>>, vector<8x256xf32>
    %c6_104 = arith.constant 6 : index
    %c0_105 = arith.constant 0 : index
    %115 = vector.load %arg4[%c6_104, %c0_105] : memref<9x256xf32, #tpu.memory_space<vmem>>, vector<1x256xf32>
    %116 = vector.broadcast %115 : vector<1x256xf32> to vector<8x256xf32>
    %117 = arith.mulf %114, %116 : vector<8x256xf32>
    %118 = arith.truncf %117 : vector<8x256xf32> to vector<8x256xbf16>
    %c48_106 = arith.constant 48 : index
    %c0_107 = arith.constant 0 : index
    %119 = vector.load %arg12[%c48_106, %c0_107] : memref<72x256xbf16, #tpu.memory_space<vmem>>, vector<8x256xbf16>
    tpu.vector_store %arg12[%c48_106, %c0_107], %118 {strides = array<i32>} : memref<72x256xbf16, #tpu.memory_space<vmem>>, vector<8x256xbf16>,
    %c0_108 = arith.constant 0 : index
    %c33_109 = arith.constant 33 : index
    %120 = vector.load %arg11[%c0_108, %c33_109] : memref<8x290xf32, #tpu.memory_space<vmem>>, vector<8x256xf32>
    %c7_110 = arith.constant 7 : index
    %c0_111 = arith.constant 0 : index
    %121 = vector.load %arg4[%c7_110, %c0_111] : memref<9x256xf32, #tpu.memory_space<vmem>>, vector<1x256xf32>
    %122 = vector.broadcast %121 : vector<1x256xf32> to vector<8x256xf32>
    %123 = arith.mulf %120, %122 : vector<8x256xf32>
    %124 = arith.truncf %123 : vector<8x256xf32> to vector<8x256xbf16>
    %c56_112 = arith.constant 56 : index
    %c0_113 = arith.constant 0 : index
    %125 = vector.load %arg12[%c56_112, %c0_113] : memref<72x256xbf16, #tpu.memory_space<vmem>>, vector<8x256xbf16>
    tpu.vector_store %arg12[%c56_112, %c0_113], %124 {strides = array<i32>} : memref<72x256xbf16, #tpu.memory_space<vmem>>, vector<8x256xbf16>,
    %c0_114 = arith.constant 0 : index
    %c34_115 = arith.constant 34 : index
    %126 = vector.load %arg11[%c0_114, %c34_115] : memref<8x290xf32, #tpu.memory_space<vmem>>, vector<8x256xf32>
    %c8_116 = arith.constant 8 : index
    %c0_117 = arith.constant 0 : index
    %127 = vector.load %arg4[%c8_116, %c0_117] : memref<9x256xf32, #tpu.memory_space<vmem>>, vector<1x256xf32>
    %128 = vector.broadcast %127 : vector<1x256xf32> to vector<8x256xf32>
    %129 = arith.mulf %126, %128 : vector<8x256xf32>
    %130 = arith.truncf %129 : vector<8x256xf32> to vector<8x256xbf16>
    %c64_118 = arith.constant 64 : index
    %c0_119 = arith.constant 0 : index
    %131 = vector.load %arg12[%c64_118, %c0_119] : memref<72x256xbf16, #tpu.memory_space<vmem>>, vector<8x256xbf16>
    tpu.vector_store %arg12[%c64_118, %c0_119], %130 {strides = array<i32>} : memref<72x256xbf16, #tpu.memory_space<vmem>>, vector<8x256xbf16>,
    %c0_120 = arith.constant 0 : index
    %c0_121 = arith.constant 0 : index
    %132 = vector.load %arg3[%c0_120, %c0_121] : memref<8x72xbf16, #tpu.memory_space<vmem>>, vector<8x72xbf16>
    %c0_122 = arith.constant 0 : index
    %c0_123 = arith.constant 0 : index
    %133 = vector.load %arg12[%c0_122, %c0_123] : memref<72x256xbf16, #tpu.memory_space<vmem>>, vector<72x256xbf16>
    %cst_124 = arith.constant dense<0.000000e+00> : vector<8x256xf32>
    %134 = tpu.matmul %132, %133, %cst_124 {dimension_numbers = #tpu.dot_dimension_numbers<[1], [0], [0], [1], [0, 0, 1, 1], [], []>} : vector<8x72xbf16>, vector<72x256xbf16>, vector<8x256xf32> -> vector<8x256xf32>
    %135 = vector.broadcast %2 : vector<8x1xf32> to vector<8x256xf32>
    %136 = arith.mulf %134, %135 : vector<8x256xf32>
    %137 = vector.broadcast %3 : vector<8x1xf32> to vector<8x256xf32>
    %138 = arith.addf %136, %137 : vector<8x256xf32>
    %cst_125 = arith.constant 0.000000e+00 : f32
    %139 = vector.broadcast %cst_125 : f32 to vector<8x256xf32>
    %140 = arith.maximumf %138, %139 : vector<8x256xf32>
    %cst_126 = arith.constant dense<0.000000e+00> : vector<8xf32>
    %141 = vector.multi_reduction <add>, %140, %cst_126 [1] : vector<8x256xf32> to vector<8xf32>
    %142 = vector.shape_cast %141 : vector<8xf32> to vector<8x1xf32>
    %cst_127 = arith.constant 2.560000e+02 : f32
    %143 = vector.broadcast %cst_127 : f32 to vector<8x1xf32>
    %144 = arith.divf %142, %143 : vector<8x1xf32>
    %145 = vector.broadcast %144 : vector<8x1xf32> to vector<8x4xf32>
    %146 = arith.mulf %5, %145 : vector<8x4xf32>
    %cst_128 = arith.constant dense<0.000000e+00> : vector<4xf32>
    %147 = vector.multi_reduction <add>, %146, %cst_128 [0] : vector<8x4xf32> to vector<4xf32>
    %148 = vector.shape_cast %147 : vector<4xf32> to vector<1x4xf32>
    %149 = arith.addf %148, %6 : vector<1x4xf32>
    %cst_129 = arith.constant 0.000000e+00 : f32
    %150 = vector.broadcast %cst_129 : f32 to vector<1x4xf32>
    %151 = arith.maximumf %149, %150 : vector<1x4xf32>
    %c0_130 = arith.constant 0 : index
    %c0_131 = arith.constant 0 : index
    %152 = vector.load %arg7[%c0_130, %c0_131] : memref<8x4xf32, #tpu.memory_space<vmem>>, vector<8x4xf32>
    %153 = vector.broadcast %151 : vector<1x4xf32> to vector<8x4xf32>
    %154 = arith.mulf %152, %153 : vector<8x4xf32>
    %cst_132 = arith.constant dense<0.000000e+00> : vector<8xf32>
    %155 = vector.multi_reduction <add>, %154, %cst_132 [1] : vector<8x4xf32> to vector<8xf32>
    %156 = vector.shape_cast %155 : vector<8xf32> to vector<8x1xf32>
    %157 = arith.addf %156, %4 : vector<8x1xf32>
    %cst_133 = arith.constant 0.000000e+00 : f32
    %158 = vector.broadcast %cst_133 : f32 to vector<8x1xf32>
    %159 = arith.subf %158, %157 : vector<8x1xf32>
    %160 = math.exp %159 : vector<8x1xf32>
    %cst_134 = arith.constant 1.000000e+00 : f32
    %161 = vector.broadcast %cst_134 : f32 to vector<8x1xf32>
    %162 = arith.addf %161, %160 : vector<8x1xf32>
    %cst_135 = arith.constant 1.000000e+00 : f32
    %163 = vector.broadcast %cst_135 : f32 to vector<8x1xf32>
    %164 = arith.divf %163, %162 : vector<8x1xf32>
    %165 = vector.broadcast %164 : vector<8x1xf32> to vector<8x256xf32>
    %166 = arith.mulf %140, %165 : vector<8x256xf32>
    %167 = arith.addf %166, %12 : vector<8x256xf32>
    %cst_136 = arith.constant 0.000000e+00 : f32
    %168 = vector.broadcast %cst_136 : f32 to vector<8x256xf32>
    %169 = arith.maximumf %167, %168 : vector<8x256xf32>
    %c0_137 = arith.constant 0 : index
    %c0_138 = arith.constant 0 : index
    %c0_139 = arith.constant 0 : index
    %170 = vector.load %arg8[%c0_137, %c0_138, %c0_139] : memref<1x8x256xf32, #tpu.memory_space<vmem>>, vector<1x8x256xf32>
    %171 = vector.shape_cast %170 : vector<1x8x256xf32> to vector<8x256xf32>
    %172 = vector.shape_cast %169 : vector<8x256xf32> to vector<1x8x256xf32>
    tpu.vector_store %arg8[%c0_137, %c0_138, %c0_139], %172 {strides = array<i32>} : memref<1x8x256xf32, #tpu.memory_space<vmem>>, vector<1x8x256xf32>,
    return
  }
  func.func @transform_0(%arg0: i32) -> (i32, i32, i32) {
    %c0_i32 = arith.constant 0 : i32
    %c0_i32_0 = arith.constant 0 : i32
    %c0_i32_1 = arith.constant 0 : i32
    return %arg0, %c0_i32, %c0_i32_0 : i32, i32, i32
  }
  func.func @transform_1(%arg0: i32) -> (i32, i32) {
    %c0_i32 = arith.constant 0 : i32
    %c0_i32_0 = arith.constant 0 : i32
    %c0_i32_1 = arith.constant 0 : i32
    return %c0_i32, %c0_i32_0 : i32, i32
  }
  func.func @transform_2(%arg0: i32) -> (i32, i32) {
    %c0_i32 = arith.constant 0 : i32
    %c0_i32_0 = arith.constant 0 : i32
    %c0_i32_1 = arith.constant 0 : i32
    return %c0_i32, %c0_i32_0 : i32, i32
  }
  func.func @transform_3(%arg0: i32) -> (i32, i32) {
    %c0_i32 = arith.constant 0 : i32
    %c0_i32_0 = arith.constant 0 : i32
    %c0_i32_1 = arith.constant 0 : i32
    return %c0_i32, %c0_i32_0 : i32, i32
  }
  func.func @transform_4(%arg0: i32) -> (i32, i32) {
    %c0_i32 = arith.constant 0 : i32
    %c0_i32_0 = arith.constant 0 : i32
    %c0_i32_1 = arith.constant 0 : i32
    return %c0_i32, %c0_i32_0 : i32, i32
  }
  func.func @transform_5(%arg0: i32) -> (i32, i32) {
    %c0_i32 = arith.constant 0 : i32
    %c0_i32_0 = arith.constant 0 : i32
    %c0_i32_1 = arith.constant 0 : i32
    return %c0_i32, %c0_i32_0 : i32, i32
  }
  func.func @transform_6(%arg0: i32) -> (i32, i32) {
    %c0_i32 = arith.constant 0 : i32
    %c0_i32_0 = arith.constant 0 : i32
    %c0_i32_1 = arith.constant 0 : i32
    return %c0_i32, %c0_i32_0 : i32, i32
  }
  func.func @transform_7(%arg0: i32) -> (i32, i32, i32) {
    %c0_i32 = arith.constant 0 : i32
    %c0_i32_0 = arith.constant 0 : i32
    %c0_i32_1 = arith.constant 0 : i32
    return %arg0, %c0_i32, %c0_i32_0 : i32, i32, i32
  }
}

</mosaic_0001>

<llo_original>
// kernel: tpu_custom_call.1
$region0: #{tpu_custom_call.1}
  #allocation0 [shape = 'u32[]', space=smem, size = 0x4, offset = 0x4, fixed_abs, tag = 'smem constant byte address 0x4 - core index']
  #allocation1 [shape = 'u32[144,128]{1,0:T(1,128)}', space=vmem, size = 0x12000, scoped, tag = 'internal scratch']
  #allocation2 [shape = 'f32[8,290]{1,0:T(8,128)}', space=vmem, size = 0x3000, scoped, tag = 'scratch operand']
  #allocation3 [shape = 'bf16[72,256]{1,0:T(8,128)(2,1)}', space=vmem, size = 0x9000, scoped, tag = 'scratch operand']
  #allocation4 [shape = 'f32[8,290]{1,0:T(8,128)}', space=vmem, size = 0x3000, scoped, tag = 'scratch operand']
  #allocation5 [shape = 'bf16[72,256]{1,0:T(8,128)(2,1)}', space=vmem, size = 0x9000, scoped, tag = 'scratch operand']
  %s0 = inlined_call_operand.hbm [shape: f32[2,8,256], index: 0, kind: input, shape index: {}]
  %s1 = inlined_call_operand.hbm [shape: bf16[8,72], index: 1, kind: input, shape index: {}]
  %s2 = inlined_call_operand.hbm [shape: bf16[8,72], index: 2, kind: input, shape index: {}]
  %s3 = inlined_call_operand.vmem [shape: f32[9,256], index: 3, kind: input, shape index: {}]
  %s4 = inlined_call_operand.vmem [shape: f32[8,8], index: 4, kind: input, shape index: {}]
  %s5 = inlined_call_operand.vmem [shape: f32[9,4], index: 5, kind: input, shape index: {}]
  %s6 = inlined_call_operand.vmem [shape: f32[8,4], index: 6, kind: input, shape index: {}]
  %s7 = inlined_call_operand.hbm [shape: f32[2,8,256], index: 7, kind: output, shape index: {}]
  %s8 = sld [smem:[#allocation0]]
  $region73: #{tpu_custom_call.1} parent=0
    _
  %s10 = ssub.s32 1, %s8
  %s11 = scalar_select 0, %s10, %s8
  $region1: #{tpu_custom_call.1} parent=0
    #allocation6 [shape = 'u8[16384]{0}', space=vmem, size = 0x4000, scoped, tag = 'input window, operand 0']
    #allocation7 [shape = 's32[2]{0}', space=sflag, size = 0x8, scoped, tag = 'scoped memory for tpu_custom_call.1']
    #allocation8 [shape = 's32[2]{0}', space=sflag, size = 0x8, scoped, tag = 'scoped memory for tpu_custom_call.1']
    #allocation9 [shape = 'u8[2048]{0}', space=vmem, size = 0x800, scoped, tag = 'input window, operand 1, single buffered']
    #allocation10 [shape = 's32[1]{0}', space=sflag, size = 0x4, scoped, tag = 'scoped memory for tpu_custom_call.1']
    #allocation11 [shape = 'u8[2048]{0}', space=vmem, size = 0x800, scoped, tag = 'input window, operand 2, single buffered']
    #allocation12 [shape = 'u8[16384]{0}', space=vmem, size = 0x4000, scoped, tag = 'output window, operand 0']
    %12 = vsyncpa [#allocation7], 0
    %s13 = scalar_lea.sflag [#allocation7], 1
    %14 = vsyncpa %s13, 0
    %15 = vsyncpa [#allocation10], 0
    %16 = vsyncpa [#allocation8], 0
    %s17 = scalar_lea.sflag [#allocation8], 1
    %18 = vsyncpa %s17, 0
    loop: start=0, step=1, limit=4
    $region2: #{tpu_custom_call.1} parent=1 // loop_pre_header
      _
    $region3: #{tpu_custom_call.1} parent=1 // loop_header
      %s20 = sphi 0, %s24
      %p21 = scmp.ge.s32.totalorder %s20, 4
      %s30 = sphi 0, %s32
      %s33 = sphi 0, %s30
      %s34 = sphi 0, %s33
      %s50 = sphi 0, %s34
      %s54 = sphi 0, %s54
      %s56 = sphi 0, %s54
      %s57 = sphi 0, %s56
      %s71 = sphi 0, %s57
      %s75 = sphi 0, %s75
      %s77 = sphi 0, %s75
      %s78 = sphi 0, %s77
      %s92 = sphi 0, %s78
      %s96 = sphi 0, %s96
      %s98 = sphi 0, %s96
      %s99 = sphi 0, %s98
      %s113 = sphi 0, %s99
      %s117 = sphi 0, %s117
      %s119 = sphi 0, %s117
      %s120 = sphi 0, %s119
      %s134 = sphi 0, %s120
      %s138 = sphi 0, %s138
      %s140 = sphi 0, %s138
      %s141 = sphi 0, %s140
      %s155 = sphi 0, %s141
      %s159 = sphi 0, %s159
      %s161 = sphi 0, %s159
      %s162 = sphi 0, %s161
      %s176 = sphi 0, %s162
      %s182 = sphi 0, %s184
      %s185 = sphi 0, %s182
      %s186 = sphi 0, %s185
      %s202 = sphi 0, %s186
    $region4: #{tpu_custom_call.1} parent=1 // loop_header_branch
      %23 = sbr.rel (%p21) target = $region8
    $region5: #{tpu_custom_call.1} parent=1 // loop_body
      %s25 = ssub.s32 %s20, 1
      %s26 = ssub.s32 %s20, 2
      %s27 = sadd.s32 %s20, 1
      %s28 = ssub.s32 %s20, %s27
      %p29 = scmp.eq.s32.totalorder %s28, 0
      %s31 = sadd.s32 %s30, 1
      %s32 = scalar_select %p29, %s30, %s31
      %p35 = pneg %p29
      %p36 = scmp.eq.s32.totalorder %s20, 1
      %p37 = por %p35, %p36
      %p38 = scmp.ne.s32.totalorder %s30, %s33
      %p39 = scmp.eq.s32.totalorder %s20, 0
      %p40 = por %p38, %p39
      %p41 = scmp.ne.s32.totalorder %s30, %s33
      %p42 = scmp.eq.s32.totalorder %s25, 1
      %p43 = por %p41, %p42
      %p44 = scmp.ne.s32.totalorder %s33, %s34
      %p45 = scmp.eq.s32.totalorder %s25, 0
      %p46 = por %p44, %p45
      %p47 = scmp.ne.s32.totalorder %s33, %s34
      %p48 = scmp.eq.s32.totalorder %s26, 1
      %p49 = por %p47, %p48
      %p51 = scmp.ne.s32.totalorder %s34, %s50
      %p52 = scmp.eq.s32.totalorder %s26, 0
      %p53 = por %p51, %p52
      %s55 = sadd.s32 %s54, 1
      %p58 = scmp.eq.s32.totalorder %s20, 1
      %p59 = scmp.ne.s32.totalorder %s54, %s56
      %p60 = scmp.eq.s32.totalorder %s20, 0
      %p61 = por %p59, %p60
      %p62 = scmp.ne.s32.totalorder %s54, %s56
      %p63 = scmp.eq.s32.totalorder %s25, 1
      %p64 = por %p62, %p63
      %p65 = scmp.ne.s32.totalorder %s56, %s57
      %p66 = scmp.eq.s32.totalorder %s25, 0
      %p67 = por %p65, %p66
      %p68 = scmp.ne.s32.totalorder %s56, %s57
      %p69 = scmp.eq.s32.totalorder %s26, 1
      %p70 = por %p68, %p69
      %p72 = scmp.ne.s32.totalorder %s57, %s71
      %p73 = scmp.eq.s32.totalorder %s26, 0
      %p74 = por %p72, %p73
      %s76 = sadd.s32 %s75, 1
      %p79 = scmp.eq.s32.totalorder %s20, 1
      %p80 = scmp.ne.s32.totalorder %s75, %s77
      %p81 = scmp.eq.s32.totalorder %s20, 0
      %p82 = por %p80, %p81
      %p83 = scmp.ne.s32.totalorder %s75, %s77
      %p84 = scmp.eq.s32.totalorder %s25, 1
      %p85 = por %p83, %p84
      %p86 = scmp.ne.s32.totalorder %s77, %s78
      %p87 = scmp.eq.s32.totalorder %s25, 0
      %p88 = por %p86, %p87
      %p89 = scmp.ne.s32.totalorder %s77, %s78
      %p90 = scmp.eq.s32.totalorder %s26, 1
      %p91 = por %p89, %p90
      %p93 = scmp.ne.s32.totalorder %s78, %s92
      %p94 = scmp.eq.s32.totalorder %s26, 0
      %p95 = por %p93, %p94
      %s97 = sadd.s32 %s96, 1
      %p100 = scmp.eq.s32.totalorder %s20, 1
      %p101 = scmp.ne.s32.totalorder %s96, %s98
      %p102 = scmp.eq.s32.totalorder %s20, 0
      %p103 = por %p101, %p102
      %p104 = scmp.ne.s32.totalorder %s96, %s98
      %p105 = scmp.eq.s32.totalorder %s25, 1
      %p106 = por %p104, %p105
      %p107 = scmp.ne.s32.totalorder %s98, %s99
      %p108 = scmp.eq.s32.totalorder %s25, 0
      %p109 = por %p107, %p108
      %p110 = scmp.ne.s32.totalorder %s98, %s99
      %p111 = scmp.eq.s32.totalorder %s26, 1
      %p112 = por %p110, %p111
      %p114 = scmp.ne.s32.totalorder %s99, %s113
      %p115 = scmp.eq.s32.totalorder %s26, 0
      %p116 = por %p114, %p115
      %s118 = sadd.s32 %s117, 1
      %p121 = scmp.eq.s32.totalorder %s20, 1
      %p122 = scmp.ne.s32.totalorder %s117, %s119
      %p123 = scmp.eq.s32.totalorder %s20, 0
      %p124 = por %p122, %p123
      %p125 = scmp.ne.s32.totalorder %s117, %s119
      %p126 = scmp.eq.s32.totalorder %s25, 1
      %p127 = por %p125, %p126
      %p128 = scmp.ne.s32.totalorder %s119, %s120
      %p129 = scmp.eq.s32.totalorder %s25, 0
      %p130 = por %p128, %p129
      %p131 = scmp.ne.s32.totalorder %s119, %s120
      %p132 = scmp.eq.s32.totalorder %s26, 1
      %p133 = por %p131, %p132
      %p135 = scmp.ne.s32.totalorder %s120, %s134
      %p136 = scmp.eq.s32.totalorder %s26, 0
      %p137 = por %p135, %p136
      %s139 = sadd.s32 %s138, 1
      %p142 = scmp.eq.s32.totalorder %s20, 1
      %p143 = scmp.ne.s32.totalorder %s138, %s140
      %p144 = scmp.eq.s32.totalorder %s20, 0
      %p145 = por %p143, %p144
      %p146 = scmp.ne.s32.totalorder %s138, %s140
      %p147 = scmp.eq.s32.totalorder %s25, 1
      %p148 = por %p146, %p147
      %p149 = scmp.ne.s32.totalorder %s140, %s141
      %p150 = scmp.eq.s32.totalorder %s25, 0
      %p151 = por %p149, %p150
      %p152 = scmp.ne.s32.totalorder %s140, %s141
      %p153 = scmp.eq.s32.totalorder %s26, 1
      %p154 = por %p152, %p153
      %p156 = scmp.ne.s32.totalorder %s141, %s155
      %p157 = scmp.eq.s32.totalorder %s26, 0
      %p158 = por %p156, %p157
      %s160 = sadd.s32 %s159, 1
      %p163 = scmp.eq.s32.totalorder %s20, 1
      %p164 = scmp.ne.s32.totalorder %s159, %s161
      %p165 = scmp.eq.s32.totalorder %s20, 0
      %p166 = por %p164, %p165
      %p167 = scmp.ne.s32.totalorder %s159, %s161
      %p168 = scmp.eq.s32.totalorder %s25, 1
      %p169 = por %p167, %p168
      %p170 = scmp.ne.s32.totalorder %s161, %s162
      %p171 = scmp.eq.s32.totalorder %s25, 0
      %p172 = por %p170, %p171
      %p173 = scmp.ne.s32.totalorder %s161, %s162
      %p174 = scmp.eq.s32.totalorder %s26, 1
      %p175 = por %p173, %p174
      %p177 = scmp.ne.s32.totalorder %s162, %s176
      %p178 = scmp.eq.s32.totalorder %s26, 0
      %p179 = por %p177, %p178
      %s180 = ssub.s32 %s20, %s27
      %p181 = scmp.eq.s32.totalorder %s180, 0
      %s183 = sadd.s32 %s182, 1
      %s184 = scalar_select %p181, %s182, %s183
      %p187 = pneg %p181
      %p188 = scmp.eq.s32.totalorder %s20, 1
      %p189 = por %p187, %p188
      %p190 = scmp.ne.s32.totalorder %s182, %s185
      %p191 = scmp.eq.s32.totalorder %s20, 0
      %p192 = por %p190, %p191
      %p193 = scmp.ne.s32.totalorder %s182, %s185
      %p194 = scmp.eq.s32.totalorder %s25, 1
      %p195 = por %p193, %p194
      %p196 = scmp.ne.s32.totalorder %s185, %s186
      %p197 = scmp.eq.s32.totalorder %s25, 0
      %p198 = por %p196, %p197
      %p199 = scmp.ne.s32.totalorder %s185, %s186
      %p200 = scmp.eq.s32.totalorder %s26, 1
      %p201 = por %p199, %p200
      %p203 = scmp.ne.s32.totalorder %s186, %s202
      %p204 = scmp.eq.s32.totalorder %s26, 0
      %p205 = por %p203, %p204
      %p206 = scmp.le.s32.totalorder 1, %s20
      %p207 = scmp.lt.s32.totalorder %s20, 3
      %p208 = pnand %p206, %p207
      %p209 = pneg %p208
      // Predicated region
      $region9: #{tpu_custom_call.1} parent=5 // pred_check
        _
      $region10: #{tpu_custom_call.1} parent=5 // pred_check_branch
        %211 = sbr.rel (%p208) target = $region12
      $region11: #{tpu_custom_call.1} parent=5 // pred_region
        %s212 = ssub.s32 %s20, 1
        // Predicated region
        $region13: #{tpu_custom_call.1} parent=11 // pred_check
          %p213 = pneg %p67
        $region14: #{tpu_custom_call.1} parent=11 // pred_check_branch
          %215 = sbr.rel (%p213) target = $region16
        $region15: #{tpu_custom_call.1} parent=11 // pred_region
          %s217 = ssub.s32 64, 64
          %218 = vsyncadd [#allocation10], %s217
          %s220 = sshll.u32 [#allocation9], 4
          %s221 = int_to_ptr.vmem [resolvable:$true] %s220
          %223 = dma.hbm_to_vmem [thread:$0]  %s1, 64, %s221, [#allocation10]
        $region16: #{tpu_custom_call.1} parent=11 // pred_fallthru
          _
        // Predicated region
        $region17: #{tpu_custom_call.1} parent=11 // pred_check
          %p224 = pneg %p88
        $region18: #{tpu_custom_call.1} parent=11 // pred_check_branch
          %226 = sbr.rel (%p224) target = $region20
        $region19: #{tpu_custom_call.1} parent=11 // pred_region
          %s228 = ssub.s32 64, 64
          %229 = vsyncadd [#allocation10], %s228
          %s231 = sshll.u32 [#allocation11], 4
          %s232 = int_to_ptr.vmem [resolvable:$true] %s231
          %234 = dma.hbm_to_vmem [thread:$0]  %s2, 64, %s232, [#allocation10]
        $region20: #{tpu_custom_call.1} parent=11 // pred_fallthru
          _
        // Predicated region
        $region21: #{tpu_custom_call.1} parent=11 // pred_check
          %p235 = pneg %p109
        $region22: #{tpu_custom_call.1} parent=11 // pred_check_branch
          %237 = sbr.rel (%p235) target = $region24
        $region23: #{tpu_custom_call.1} parent=11 // pred_region
          _
        $region24: #{tpu_custom_call.1} parent=11 // pred_fallthru
          _
        // Predicated region
        $region25: #{tpu_custom_call.1} parent=11 // pred_check
          %p238 = pneg %p130
        $region26: #{tpu_custom_call.1} parent=11 // pred_check_branch
          %240 = sbr.rel (%p238) target = $region28
        $region27: #{tpu_custom_call.1} parent=11 // pred_region
          _
        $region28: #{tpu_custom_call.1} parent=11 // pred_fallthru
          _
        // Predicated region
        $region29: #{tpu_custom_call.1} parent=11 // pred_check
          %p241 = pneg %p151
        $region30: #{tpu_custom_call.1} parent=11 // pred_check_branch
          %243 = sbr.rel (%p241) target = $region32
        $region31: #{tpu_custom_call.1} parent=11 // pred_region
          _
        $region32: #{tpu_custom_call.1} parent=11 // pred_fallthru
          _
        // Predicated region
        $region33: #{tpu_custom_call.1} parent=11 // pred_check
          %p244 = pneg %p172
        $region34: #{tpu_custom_call.1} parent=11 // pred_check_branch
          %246 = sbr.rel (%p244) target = $region36
        $region35: #{tpu_custom_call.1} parent=11 // pred_region
          _
        $region36: #{tpu_custom_call.1} parent=11 // pred_fallthru
          _
      $region12: #{tpu_custom_call.1} parent=5 // pred_fallthru
        _
      %p247 = scmp.lt.s32.totalorder %s20, 2
      // Predicated region
      $region37: #{tpu_custom_call.1} parent=5 // pred_check
        %p248 = pneg %p247
      $region38: #{tpu_custom_call.1} parent=5 // pred_check_branch
        %250 = sbr.rel (%p248) target = $region40
      $region39: #{tpu_custom_call.1} parent=5 // pred_region
        // Predicated region
        $region41: #{tpu_custom_call.1} parent=39 // pred_check
          %p251 = pneg %p40
        $region42: #{tpu_custom_call.1} parent=39 // pred_check_branch
          %253 = sbr.rel (%p251) target = $region44
        $region43: #{tpu_custom_call.1} parent=39 // pred_region
          %s254 = sand.u32 %s30, 1
          %s255 = scalar_lea.sflag [#allocation7], %s254
          %s256 = sand.u32 %s30, 1
          %s257 = smul.addr %s256, 16
          %s258 = scalar_lea.vmem [#allocation6], %s257
          %s260 = ssub.s32 256, 256
          %261 = vsyncadd %s255, %s260
          %s262 = smul.addr %s20, 2
          %s263 = smul.addr %s262, 128
          %s264 = scalar_lea.hbm %s0, %s263
          %s266 = sshll.u32 %s258, 4
          %s267 = int_to_ptr.vmem [resolvable:$true] %s266
          %269 = dma.hbm_to_vmem [thread:$0]  %s264, 256, %s267, %s255
        $region44: #{tpu_custom_call.1} parent=39 // pred_fallthru
          _
      $region40: #{tpu_custom_call.1} parent=5 // pred_fallthru
        _
      %p270 = scmp.le.s32.totalorder 1, %s20
      %p271 = scmp.lt.s32.totalorder %s20, 3
      %p272 = pnand %p270, %p271
      %p273 = pneg %p272
      // Predicated region
      $region45: #{tpu_custom_call.1} parent=5 // pred_check
        _
      $region46: #{tpu_custom_call.1} parent=5 // pred_check_branch
        %275 = sbr.rel (%p272) target = $region48
      $region47: #{tpu_custom_call.1} parent=5 // pred_region
        %s276 = ssub.s32 %s20, 1
        %s277 = sand.u32 %s33, 1
        %s278 = scalar_lea.sflag [#allocation7], %s277
        %s279 = sand.u32 %s33, 1
        %s280 = smul.addr %s279, 16
        %s281 = scalar_lea.vmem [#allocation6], %s280
        // Predicated region
        $region49: #{tpu_custom_call.1} parent=47 // pred_check
          %p282 = pneg %p46
        $region50: #{tpu_custom_call.1} parent=47 // pred_check_branch
          %284 = sbr.rel (%p282) target = $region52
        $region51: #{tpu_custom_call.1} parent=47 // pred_region
          %285 = dma.done %s278, 256
        $region52: #{tpu_custom_call.1} parent=47 // pred_fallthru
          _
        // Predicated region
        $region53: #{tpu_custom_call.1} parent=47 // pred_check
          %p286 = pneg %p67
        $region54: #{tpu_custom_call.1} parent=47 // pred_check_branch
          %288 = sbr.rel (%p286) target = $region56
        $region55: #{tpu_custom_call.1} parent=47 // pred_region
          %289 = dma.done [#allocation10], 64
        $region56: #{tpu_custom_call.1} parent=47 // pred_fallthru
          _
        // Predicated region
        $region57: #{tpu_custom_call.1} parent=47 // pred_check
          %p290 = pneg %p88
        $region58: #{tpu_custom_call.1} parent=47 // pred_check_branch
          %292 = sbr.rel (%p290) target = $region60
        $region59: #{tpu_custom_call.1} parent=47 // pred_region
          %293 = dma.done [#allocation10], 64
        $region60: #{tpu_custom_call.1} parent=47 // pred_fallthru
          _
        %s294 = sand.u32 %s33, 1
        %s295 = scalar_lea.sflag [#allocation7], %s294
        %s296 = sand.u32 %s33, 1
        %s297 = smul.addr %s296, 16
        %s298 = scalar_lea.vmem [#allocation6], %s297
        %p299 = pneg %p46
        %p300 = pneg %p43
        %p301 = pneg %p67
        %p302 = pneg %p64
        %p303 = pneg %p88
        %p304 = pneg %p85
        %p305 = pneg %p109
        %p306 = pneg %p106
        %p307 = pneg %p130
        %p308 = pneg %p127
        %p309 = pneg %p151
        %p310 = pneg %p148
        %p311 = pneg %p172
        %p312 = pneg %p169
        %p313 = pneg %p198
        %p314 = pneg %p195
        %s315 = sand.u32 %s185, 1
        %s316 = scalar_lea.sflag [#allocation8], %s315
        %s317 = sand.u32 %s185, 1
        %s318 = smul.addr %s317, 16
        %s319 = scalar_lea.vmem [#allocation12], %s318
        %v321 = vld [vmem:[%s4] sm:$0xff]
        %v322 = vld [vmem:[%s5] sm:$0xff]
        %v323 = vld [vmem:[%s5 + $0x8] sm:$0x1]
        %324 = vst [vmem:[#allocation2] sm:$0xff] 0.0
        %325 = vst [vmem:[#allocation2 + $0x8] sm:$0xff] 0.0
        %vm326 = vcmask 277504
        %327 = vst.msk [vmem:[#allocation2 + $0x10] sm:$0xff] %vm326, 0.0
        %328 = vst [vmem:[#allocation4] sm:$0xff] 0.0
        %329 = vst [vmem:[#allocation4 + $0x8] sm:$0xff] 0.0
        %330 = vst.msk [vmem:[#allocation4 + $0x10] sm:$0xff] %vm326, 0.0
        %v331 = vld [vmem:[%s281] sm:$0xff]
        %v332 = vld [vmem:[%s281 + $0x8] sm:$0xff]
        %335 = vrot.lane.b32.xlu0 %v331, 17
        %v336 = vpop.permute.xlu0 %335
        %337 = vrot.lane.b32.xlu0 %v332, 17
        %v338 = vpop.permute.xlu0 %337
        %vm339 = vcmask 138240
        %v340 = vsel %vm339, %v336, %v338
        %vm344 = vcmask 1047688
        %345 = vst.msk [vmem:[#allocation2] sm:$0xff] %vm344, %v336
        %346 = vst [vmem:[#allocation2 + $0x8] sm:$0xff] %v340
        %347 = vst.msk [vmem:[#allocation2 + $0x10] sm:$0xff] %vm339, %v338
        %v348 = vld [vmem:[#allocation2] sm:$0xff]
        %v349 = vld [vmem:[#allocation2 + $0x8] sm:$0xff]
        %v350 = vld [vmem:[%s3] ss:$8 sm:$0x3]
        %v352 = vlaneseq
        %v353 = vshrl.u32 %v352, 7
        %v354 = vsub.s32 0, %v353
        %v355 = vrot.slane %v350, %v354
        %v356 = vlaneseq
        %v357 = vshrl.u32 %v356, 7
        %v358 = vsub.s32 1, %v357
        %v359 = vrot.slane %v350, %v358
        %v362 = vmul.f32 %v348, %v355
        %v363 = vmul.f32 %v349, %v359
        %v364 = vpack.c.bf16 %v362, %v362
        %v365 = vpack.c.bf16 %v363, %v363
        %v368 = vunpack.c.l.b16 %v364
        %v369 = vunpack.c.l.b16 %v365
        %v370 = vpack.c.b16 %v369, %v368
        %372 = vst [vmem:[#allocation3] sm:$0xff] %v370
        %v373 = vld [vmem:[#allocation2] sm:$0xff]
        %v374 = vld [vmem:[#allocation2 + $0x8] sm:$0xff]
        %v375 = vld [vmem:[#allocation2 + $0x10] sm:$0xff]
        %s376 = scalar_lea.vmem %s3, 1
        %v377 = vld [vmem:[%s376] ss:$8 sm:$0x3]
        %v379 = vlaneseq
        %v380 = vshrl.u32 %v379, 7
        %v381 = vsub.s32 0, %v380
        %v382 = vrot.slane %v377, %v381
        %v383 = vlaneseq
        %v384 = vshrl.u32 %v383, 7
        %v385 = vsub.s32 1, %v384
        %v386 = vrot.slane %v377, %v385
        %387 = vrot.lane.b32.xlu0 %v382, 1
        %v388 = vpop.permute.xlu0 %387
        %389 = vrot.lane.b32.xlu0 %v386, 1
        %v390 = vpop.permute.xlu0 %389
        %vm391 = vcmask 7168
        %v392 = vsel %vm391, %v388, %v390
        %v396 = vmul.f32 %v373, %v388
        %v397 = vmul.f32 %v374, %v392
        %v398 = vmul.f32 %v375, %v390
        %v399 = vpack.c.bf16 %v396, %v396
        %v400 = vpack.c.bf16 %v397, %v397
        %v401 = vpack.c.bf16 %v398, %v398
        %v405 = vunpack.c.l.b16 %v399
        %v406 = vunpack.c.l.b16 %v400
        %v407 = vunpack.c.l.b16 %v401
        %v408 = vpack.c.b16 %v406, %v405
        %v409 = vpack.c.b16 %v407, %v407
        %410 = vrot.lane.b32.xlu0 %v408, 127
        %v411 = vpop.permute.xlu0 %410
        %412 = vrot.lane.b32.xlu0 %v409, 127
        %v413 = vpop.permute.xlu0 %412
        %v414 = vrot.slane %v411, 4
        %v415 = vrot.slane %v413, 4
        %vm416 = vcmask 1043456
        %v417 = vsel %vm416, %v414, %v415
        %vm418 = vcmask 1039360
        %v419 = vsel %vm418, %v411, %v417
        %421 = vst [vmem:[#allocation3 + $0x8] sm:$0xff] %v419
        %v422 = vld [vmem:[#allocation2] sm:$0xff]
        %v423 = vld [vmem:[#allocation2 + $0x8] sm:$0xff]
        %v424 = vld [vmem:[#allocation2 + $0x10] sm:$0xff]
        %s425 = scalar_lea.vmem %s3, 2
        %v426 = vld [vmem:[%s425] ss:$8 sm:$0x3]
        %v428 = vlaneseq
        %v429 = vshrl.u32 %v428, 7
        %v430 = vsub.s32 0, %v429
        %v431 = vrot.slane %v426, %v430
        %v432 = vlaneseq
        %v433 = vshrl.u32 %v432, 7
        %v434 = vsub.s32 1, %v433
        %v435 = vrot.slane %v426, %v434
        %436 = vrot.lane.b32.xlu0 %v431, 2
        %v437 = vpop.permute.xlu0 %436
        %438 = vrot.lane.b32.xlu0 %v435, 2
        %v439 = vpop.permute.xlu0 %438
        %vm440 = vcmask 15360
        %v441 = vsel %vm440, %v437, %v439
        %v445 = vmul.f32 %v422, %v437
        %v446 = vmul.f32 %v423, %v441
        %v447 = vmul.f32 %v424, %v439
        %v448 = vpack.c.bf16 %v445, %v445
        %v449 = vpack.c.bf16 %v446, %v446
        %v450 = vpack.c.bf16 %v447, %v447
        %v454 = vunpack.c.l.b16 %v448
        %v455 = vunpack.c.l.b16 %v449
        %v456 = vunpack.c.l.b16 %v450
        %v457 = vpack.c.b16 %v455, %v454
        %v458 = vpack.c.b16 %v456, %v456
        %459 = vrot.lane.b32.xlu0 %v457, 126
        %v460 = vpop.permute.xlu0 %459
        %461 = vrot.lane.b32.xlu0 %v458, 126
        %v462 = vpop.permute.xlu0 %461
        %v463 = vrot.slane %v460, 4
        %v464 = vrot.slane %v462, 4
        %v465 = vsel %vm416, %v463, %v464
        %vm466 = vcmask 1031168
        %v467 = vsel %vm466, %v460, %v465
        %469 = vst [vmem:[#allocation3 + $0x10] sm:$0xff] %v467
        %v470 = vld [vmem:[#allocation2] sm:$0xff]
        %v471 = vld [vmem:[#allocation2 + $0x8] sm:$0xff]
        %v472 = vld [vmem:[#allocation2 + $0x10] sm:$0xff]
        %s473 = scalar_lea.vmem %s3, 3
        %v474 = vld [vmem:[%s473] ss:$8 sm:$0x3]
        %v476 = vlaneseq
        %v477 = vshrl.u32 %v476, 7
        %v478 = vsub.s32 0, %v477
        %v479 = vrot.slane %v474, %v478
        %v480 = vlaneseq
        %v481 = vshrl.u32 %v480, 7
        %v482 = vsub.s32 1, %v481
        %v483 = vrot.slane %v474, %v482
        %484 = vrot.lane.b32.xlu0 %v479, 16
        %v485 = vpop.permute.xlu0 %484
        %486 = vrot.lane.b32.xlu0 %v483, 16
        %v487 = vpop.permute.xlu0 %486
        %vm488 = vcmask 130048
        %v489 = vsel %vm488, %v485, %v487
        %v493 = vmul.f32 %v470, %v485
        %v494 = vmul.f32 %v471, %v489
        %v495 = vmul.f32 %v472, %v487
        %v496 = vpack.c.bf16 %v493, %v493
        %v497 = vpack.c.bf16 %v494, %v494
        %v498 = vpack.c.bf16 %v495, %v495
        %v502 = vunpack.c.l.b16 %v496
        %v503 = vunpack.c.l.b16 %v497
        %v504 = vunpack.c.l.b16 %v498
        %v505 = vpack.c.b16 %v503, %v502
        %v506 = vpack.c.b16 %v504, %v504
        %507 = vrot.lane.b32.xlu0 %v505, 112
        %v508 = vpop.permute.xlu0 %507
        %509 = vrot.lane.b32.xlu0 %v506, 112
        %v510 = vpop.permute.xlu0 %509
        %v511 = vrot.slane %v508, 4
        %v512 = vrot.slane %v510, 4
        %v513 = vsel %vm416, %v511, %v512
        %vm514 = vcmask 916480
        %v515 = vsel %vm514, %v508, %v513
        %517 = vst [vmem:[#allocation3 + $0x18] sm:$0xff] %v515
        %v518 = vld [vmem:[#allocation2] sm:$0xff]
        %v519 = vld [vmem:[#allocation2 + $0x8] sm:$0xff]
        %v520 = vld [vmem:[#allocation2 + $0x10] sm:$0xff]
        %s521 = scalar_lea.vmem %s3, 4
        %v522 = vld [vmem:[%s521] ss:$8 sm:$0x3]
        %v524 = vlaneseq
        %v525 = vshrl.u32 %v524, 7
        %v526 = vsub.s32 0, %v525
        %v527 = vrot.slane %v522, %v526
        %v528 = vlaneseq
        %v529 = vshrl.u32 %v528, 7
        %v530 = vsub.s32 1, %v529
        %v531 = vrot.slane %v522, %v530
        %532 = vrot.lane.b32.xlu0 %v527, 17
        %v533 = vpop.permute.xlu0 %532
        %534 = vrot.lane.b32.xlu0 %v531, 17
        %v535 = vpop.permute.xlu0 %534
        %v536 = vsel %vm339, %v533, %v535
        %v540 = vmul.f32 %v518, %v533
        %v541 = vmul.f32 %v519, %v536
        %v542 = vmul.f32 %v520, %v535
        %v543 = vpack.c.bf16 %v540, %v540
        %v544 = vpack.c.bf16 %v541, %v541
        %v545 = vpack.c.bf16 %v542, %v542
        %v549 = vunpack.c.l.b16 %v543
        %v550 = vunpack.c.l.b16 %v544
        %v551 = vunpack.c.l.b16 %v545
        %v552 = vpack.c.b16 %v550, %v549
        %v553 = vpack.c.b16 %v551, %v551
        %554 = vrot.lane.b32.xlu0 %v552, 111
        %v555 = vpop.permute.xlu0 %554
        %556 = vrot.lane.b32.xlu0 %v553, 111
        %v557 = vpop.permute.xlu0 %556
        %v558 = vrot.slane %v555, 4
        %v559 = vrot.slane %v557, 4
        %v560 = vsel %vm416, %v558, %v559
        %vm561 = vcmask 908288
        %v562 = vsel %vm561, %v555, %v560
        %564 = vst [vmem:[#allocation3 + $0x20] sm:$0xff] %v562
        %v565 = vld [vmem:[#allocation2] sm:$0xff]
        %v566 = vld [vmem:[#allocation2 + $0x8] sm:$0xff]
        %v567 = vld [vmem:[#allocation2 + $0x10] sm:$0xff]
        %s568 = scalar_lea.vmem %s3, 5
        %v569 = vld [vmem:[%s568] ss:$8 sm:$0x3]
        %v571 = vlaneseq
        %v572 = vshrl.u32 %v571, 7
        %v573 = vsub.s32 0, %v572
        %v574 = vrot.slane %v569, %v573
        %v575 = vlaneseq
        %v576 = vshrl.u32 %v575, 7
        %v577 = vsub.s32 1, %v576
        %v578 = vrot.slane %v569, %v577
        %579 = vrot.lane.b32.xlu0 %v574, 18
        %v580 = vpop.permute.xlu0 %579
        %581 = vrot.lane.b32.xlu0 %v578, 18
        %v582 = vpop.permute.xlu0 %581
        %vm583 = vcmask 146432
        %v584 = vsel %vm583, %v580, %v582
        %v588 = vmul.f32 %v565, %v580
        %v589 = vmul.f32 %v566, %v584
        %v590 = vmul.f32 %v567, %v582
        %v591 = vpack.c.bf16 %v588, %v588
        %v592 = vpack.c.bf16 %v589, %v589
        %v593 = vpack.c.bf16 %v590, %v590
        %v597 = vunpack.c.l.b16 %v591
        %v598 = vunpack.c.l.b16 %v592
        %v599 = vunpack.c.l.b16 %v593
        %v600 = vpack.c.b16 %v598, %v597
        %v601 = vpack.c.b16 %v599, %v599
        %602 = vrot.lane.b32.xlu0 %v600, 110
        %v603 = vpop.permute.xlu0 %602
        %604 = vrot.lane.b32.xlu0 %v601, 110
        %v605 = vpop.permute.xlu0 %604
        %v606 = vrot.slane %v603, 4
        %v607 = vrot.slane %v605, 4
        %v608 = vsel %vm416, %v606, %v607
        %vm609 = vcmask 900096
        %v610 = vsel %vm609, %v603, %v608
        %612 = vst [vmem:[#allocation3 + $0x28] sm:$0xff] %v610
        %v613 = vld [vmem:[#allocation2] sm:$0xff]
        %v614 = vld [vmem:[#allocation2 + $0x8] sm:$0xff]
        %v615 = vld [vmem:[#allocation2 + $0x10] sm:$0xff]
        %s616 = scalar_lea.vmem %s3, 6
        %v617 = vld [vmem:[%s616] ss:$8 sm:$0x3]
        %v619 = vlaneseq
        %v620 = vshrl.u32 %v619, 7
        %v621 = vsub.s32 0, %v620
        %v622 = vrot.slane %v617, %v621
        %v623 = vlaneseq
        %v624 = vshrl.u32 %v623, 7
        %v625 = vsub.s32 1, %v624
        %v626 = vrot.slane %v617, %v625
        %627 = vrot.lane.b32.xlu0 %v622, 32
        %v628 = vpop.permute.xlu0 %627
        %629 = vrot.lane.b32.xlu0 %v626, 32
        %v630 = vpop.permute.xlu0 %629
        %vm631 = vcmask 261120
        %v632 = vsel %vm631, %v628, %v630
        %v636 = vmul.f32 %v613, %v628
        %v637 = vmul.f32 %v614, %v632
        %v638 = vmul.f32 %v615, %v630
        %v639 = vpack.c.bf16 %v636, %v636
        %v640 = vpack.c.bf16 %v637, %v637
        %v641 = vpack.c.bf16 %v638, %v638
        %v645 = vunpack.c.l.b16 %v639
        %v646 = vunpack.c.l.b16 %v640
        %v647 = vunpack.c.l.b16 %v641
        %v648 = vpack.c.b16 %v646, %v645
        %v649 = vpack.c.b16 %v647, %v647
        %650 = vrot.lane.b32.xlu0 %v648, 96
        %v651 = vpop.permute.xlu0 %650
        %652 = vrot.lane.b32.xlu0 %v649, 96
        %v653 = vpop.permute.xlu0 %652
        %v654 = vrot.slane %v651, 4
        %v655 = vrot.slane %v653, 4
        %v656 = vsel %vm416, %v654, %v655
        %vm657 = vcmask 785408
        %v658 = vsel %vm657, %v651, %v656
        %660 = vst [vmem:[#allocation3 + $0x30] sm:$0xff] %v658
        %v661 = vld [vmem:[#allocation2] sm:$0xff]
        %v662 = vld [vmem:[#allocation2 + $0x8] sm:$0xff]
        %v663 = vld [vmem:[#allocation2 + $0x10] sm:$0xff]
        %s664 = scalar_lea.vmem %s3, 7
        %v665 = vld [vmem:[%s664] ss:$8 sm:$0x3]
        %v667 = vlaneseq
        %v668 = vshrl.u32 %v667, 7
        %v669 = vsub.s32 0, %v668
        %v670 = vrot.slane %v665, %v669
        %v671 = vlaneseq
        %v672 = vshrl.u32 %v671, 7
        %v673 = vsub.s32 1, %v672
        %v674 = vrot.slane %v665, %v673
        %675 = vrot.lane.b32.xlu0 %v670, 33
        %v676 = vpop.permute.xlu0 %675
        %677 = vrot.lane.b32.xlu0 %v674, 33
        %v678 = vpop.permute.xlu0 %677
        %vm679 = vcmask 269312
        %v680 = vsel %vm679, %v676, %v678
        %v684 = vmul.f32 %v661, %v676
        %v685 = vmul.f32 %v662, %v680
        %v686 = vmul.f32 %v663, %v678
        %v687 = vpack.c.bf16 %v684, %v684
        %v688 = vpack.c.bf16 %v685, %v685
        %v689 = vpack.c.bf16 %v686, %v686
        %v693 = vunpack.c.l.b16 %v687
        %v694 = vunpack.c.l.b16 %v688
        %v695 = vunpack.c.l.b16 %v689
        %v696 = vpack.c.b16 %v694, %v693
        %v697 = vpack.c.b16 %v695, %v695
        %698 = vrot.lane.b32.xlu0 %v696, 95
        %v699 = vpop.permute.xlu0 %698
        %700 = vrot.lane.b32.xlu0 %v697, 95
        %v701 = vpop.permute.xlu0 %700
        %v702 = vrot.slane %v699, 4
        %v703 = vrot.slane %v701, 4
        %v704 = vsel %vm416, %v702, %v703
        %vm705 = vcmask 777216
        %v706 = vsel %vm705, %v699, %v704
        %708 = vst [vmem:[#allocation3 + $0x38] sm:$0xff] %v706
        %v709 = vld [vmem:[#allocation2] sm:$0xff]
        %v710 = vld [vmem:[#allocation2 + $0x8] sm:$0xff]
        %v711 = vld [vmem:[#allocation2 + $0x10] sm:$0xff]
        %s712 = scalar_lea.vmem %s3, 16
        %v713 = vld [vmem:[%s712] ss:$8 sm:$0x3]
        %v715 = vlaneseq
        %v716 = vshrl.u32 %v715, 7
        %v717 = vsub.s32 0, %v716
        %v718 = vrot.slane %v713, %v717
        %v719 = vlaneseq
        %v720 = vshrl.u32 %v719, 7
        %v721 = vsub.s32 1, %v720
        %v722 = vrot.slane %v713, %v721
        %723 = vrot.lane.b32.xlu0 %v718, 34
        %v724 = vpop.permute.xlu0 %723
        %725 = vrot.lane.b32.xlu0 %v722, 34
        %v726 = vpop.permute.xlu0 %725
        %v727 = vsel %vm326, %v724, %v726
        %v731 = vmul.f32 %v709, %v724
        %v732 = vmul.f32 %v710, %v727
        %v733 = vmul.f32 %v711, %v726
        %v734 = vpack.c.bf16 %v731, %v731
        %v735 = vpack.c.bf16 %v732, %v732
        %v736 = vpack.c.bf16 %v733, %v733
        %v740 = vunpack.c.l.b16 %v734
        %v741 = vunpack.c.l.b16 %v735
        %v742 = vunpack.c.l.b16 %v736
        %v743 = vpack.c.b16 %v741, %v740
        %v744 = vpack.c.b16 %v742, %v742
        %745 = vrot.lane.b32.xlu0 %v743, 94
        %v746 = vpop.permute.xlu0 %745
        %747 = vrot.lane.b32.xlu0 %v744, 94
        %v748 = vpop.permute.xlu0 %747
        %v749 = vrot.slane %v746, 4
        %v750 = vrot.slane %v748, 4
        %v751 = vsel %vm416, %v749, %v750
        %vm752 = vcmask 769024
        %v753 = vsel %vm752, %v746, %v751
        %755 = vst [vmem:[#allocation3 + $0x40] sm:$0xff] %v753
        %v756 = vld [vmem:[#allocation9] sm:$0xf]
        %v757 = vld [vmem:[#allocation3] sm:$0xff]
        %v758 = vld [vmem:[#allocation3 + $0x8] sm:$0xff]
        %v759 = vld [vmem:[#allocation3 + $0x10] sm:$0xff]
        %v760 = vld [vmem:[#allocation3 + $0x18] sm:$0xff]
        %v761 = vld [vmem:[#allocation3 + $0x20] sm:$0xff]
        %v762 = vld [vmem:[#allocation3 + $0x28] sm:$0xff]
        %v763 = vld [vmem:[#allocation3 + $0x30] sm:$0xff]
        %v764 = vld [vmem:[#allocation3 + $0x38] sm:$0xff]
        %v765 = vld [vmem:[#allocation3 + $0x40] sm:$0xff]
        %v775 = vunpack.c.l.b16 %v757
        %v776 = vunpack.c.h.b16 %v757
        %v777 = vunpack.c.l.b16 %v758
        %v778 = vunpack.c.h.b16 %v758
        %v779 = vunpack.c.l.b16 %v759
        %v780 = vunpack.c.h.b16 %v759
        %v781 = vunpack.c.l.b16 %v760
        %v782 = vunpack.c.h.b16 %v760
        %v783 = vunpack.c.l.b16 %v761
        %v784 = vunpack.c.h.b16 %v761
        %v785 = vunpack.c.l.b16 %v762
        %v786 = vunpack.c.h.b16 %v762
        %v787 = vunpack.c.l.b16 %v763
        %v788 = vunpack.c.h.b16 %v763
        %v789 = vunpack.c.l.b16 %v764
        %v790 = vunpack.c.h.b16 %v764
        %v791 = vunpack.c.l.b16 %v765
        %v792 = vunpack.c.h.b16 %v765
        %v793 = vpack.c.b16 %v777, %v775
        %v794 = vpack.c.b16 %v778, %v776
        %v795 = vpack.c.b16 %v781, %v779
        %v796 = vpack.c.b16 %v782, %v780
        %v797 = vpack.c.b16 %v785, %v783
        %v798 = vpack.c.b16 %v786, %v784
        %v799 = vpack.c.b16 %v789, %v787
        %v800 = vpack.c.b16 %v790, %v788
        %v801 = vpack.c.b16 %v791, %v791
        %v802 = vpack.c.b16 %v792, %v792
        %vm811 = vcmask 588800
        %v813 = vsel %vm811, %v756, 0
        %vm815 = vcmask 1043456
        %v817 = vsel %vm815, %v801, 0
        %v820 = vsel %vm815, %v802, 0
        %822 = vmatprep.subr.bf16.mxu0 %v794
        %823 = vmatpush1.bf16.msra.mxu0 %v793
        %824 = vmatprep.subr.bf16.mxu0 %v796
        %825 = vmatpush1.bf16.msra.mxu0 %v795
        %826 = vmatprep.subr.bf16.mxu0 %v798
        %827 = vmatpush1.bf16.msra.mxu0 %v797
        %828 = vmatprep.subr.bf16.mxu0 %v800
        %829 = vmatpush1.bf16.msra.mxu0 %v799
        %830 = vmatprep.subr.bf16.mxu0 %v820
        %831 = vmatpush1.bf16.msra.mxu0 %v817
        %832 = vmatprep.subr.bf16.mxu0 0
        %833 = vmatpush1.bf16.msra.mxu0 0
        %834 = vmatprep.subr.bf16.mxu0 0
        %835 = vmatpush1.bf16.msra.mxu0 0
        %836 = vmatprep.subr.bf16.mxu0 0
        %837 = vmatpush1.bf16.msra.mxu0 0
        %838 = vmatprep.subr.bf16.mxu0 0
        %839 = vmatpush1.bf16.msra.mxu0 0
        %840 = vmatprep.subr.bf16.mxu0 0
        %841 = vmatpush1.bf16.msra.mxu0 0
        %842 = vmatprep.subr.bf16.mxu0 0
        %843 = vmatpush1.bf16.msra.mxu0 0
        %844 = vmatprep.subr.bf16.mxu0 0
        %845 = vmatpush1.bf16.msra.mxu0 0
        %846 = vmatprep.subr.bf16.mxu0 0
        %847 = vmatpush1.bf16.msra.mxu0 0
        %848 = vmatprep.subr.bf16.mxu0 0
        %849 = vmatpush1.bf16.msra.mxu0 0
        %850 = vmatprep.subr.bf16.mxu0 0
        %851 = vmatpush1.bf16.msra.mxu0 0
        %852 = vmatprep.subr.bf16.mxu0 0
        %853 = vmatpush1.bf16.msra.mxu0 0
        %854 = vmatprep.mubr.bf16.mxu0 0
        %855 = vmatmul.mubr.bf16.gmra.mrb[0].mxu0 %v813
        %v856 = vpop.f32.mrb[0].mxu0
        %v857 = vadd.f32 0.0, %v856
        %v858 = vpop.f32.mrb[0].mxu0
        %v859 = vadd.f32 0.0, %v858
        %v860 = vpop.f32.mrb[0].mxu0
        %v861 = vpop.f32.mrb[0].mxu0
        %862 = vdwg.mxu0
        %864 = vset.pattern.permute.xlu0 0
        %865 = vperm.xlu0 %864, %v321
        %v866 = vpop.permute.xlu0 %865
        %v868 = vmul.f32 %v857, %v866
        %v869 = vmul.f32 %v859, %v866
        %870 = vset.pattern.permute.xlu0 1
        %871 = vperm.xlu0 %870, %v321
        %v872 = vpop.permute.xlu0 %871
        %v874 = vadd.f32 %v868, %v872
        %v875 = vadd.f32 %v869, %v872
        %v876 = vmax.f32 %v874, 0.0
        %v877 = vmax.f32 %v875, 0.0
        %880 = vrot.lane.b32.xlu0 %v876, 17
        %v881 = vpop.permute.xlu0 %880
        %882 = vrot.lane.b32.xlu0 %v877, 17
        %v883 = vpop.permute.xlu0 %882
        %v884 = vsel %vm339, %v881, %v883
        %888 = vst.msk [vmem:[#allocation4] sm:$0xff] %vm344, %v881
        %889 = vst [vmem:[#allocation4 + $0x8] sm:$0xff] %v884
        %890 = vst.msk [vmem:[#allocation4 + $0x10] sm:$0xff] %vm339, %v883
        %v891 = vld [vmem:[#allocation4] sm:$0xff]
        %v892 = vld [vmem:[#allocation4 + $0x8] sm:$0xff]
        %v893 = vld [vmem:[%s3] ss:$8 sm:$0x3]
        %v895 = vlaneseq
        %v896 = vshrl.u32 %v895, 7
        %v897 = vsub.s32 0, %v896
        %v898 = vrot.slane %v893, %v897
        %v899 = vlaneseq
        %v900 = vshrl.u32 %v899, 7
        %v901 = vsub.s32 1, %v900
        %v902 = vrot.slane %v893, %v901
        %v905 = vmul.f32 %v891, %v898
        %v906 = vmul.f32 %v892, %v902
        %v907 = vpack.c.bf16 %v905, %v905
        %v908 = vpack.c.bf16 %v906, %v906
        %v911 = vunpack.c.l.b16 %v907
        %v912 = vunpack.c.l.b16 %v908
        %v913 = vpack.c.b16 %v912, %v911
        %915 = vst [vmem:[#allocation5] sm:$0xff] %v913
        %v916 = vld [vmem:[#allocation4] sm:$0xff]
        %v917 = vld [vmem:[#allocation4 + $0x8] sm:$0xff]
        %v918 = vld [vmem:[#allocation4 + $0x10] sm:$0xff]
        %v919 = vld [vmem:[%s376] ss:$8 sm:$0x3]
        %v921 = vlaneseq
        %v922 = vshrl.u32 %v921, 7
        %v923 = vsub.s32 0, %v922
        %v924 = vrot.slane %v919, %v923
        %v925 = vlaneseq
        %v926 = vshrl.u32 %v925, 7
        %v927 = vsub.s32 1, %v926
        %v928 = vrot.slane %v919, %v927
        %929 = vrot.lane.b32.xlu0 %v924, 1
        %v930 = vpop.permute.xlu0 %929
        %931 = vrot.lane.b32.xlu0 %v928, 1
        %v932 = vpop.permute.xlu0 %931
        %v933 = vsel %vm391, %v930, %v932
        %v937 = vmul.f32 %v916, %v930
        %v938 = vmul.f32 %v917, %v933
        %v939 = vmul.f32 %v918, %v932
        %v940 = vpack.c.bf16 %v937, %v937
        %v941 = vpack.c.bf16 %v938, %v938
        %v942 = vpack.c.bf16 %v939, %v939
        %v946 = vunpack.c.l.b16 %v940
        %v947 = vunpack.c.l.b16 %v941
        %v948 = vunpack.c.l.b16 %v942
        %v949 = vpack.c.b16 %v947, %v946
        %v950 = vpack.c.b16 %v948, %v948
        %951 = vrot.lane.b32.xlu0 %v949, 127
        %v952 = vpop.permute.xlu0 %951
        %953 = vrot.lane.b32.xlu0 %v950, 127
        %v954 = vpop.permute.xlu0 %953
        %v955 = vrot.slane %v952, 4
        %v956 = vrot.slane %v954, 4
        %v957 = vsel %vm416, %v955, %v956
        %v958 = vsel %vm418, %v952, %v957
        %960 = vst [vmem:[#allocation5 + $0x8] sm:$0xff] %v958
        %v961 = vld [vmem:[#allocation4] sm:$0xff]
        %v962 = vld [vmem:[#allocation4 + $0x8] sm:$0xff]
        %v963 = vld [vmem:[#allocation4 + $0x10] sm:$0xff]
        %v964 = vld [vmem:[%s425] ss:$8 sm:$0x3]
        %v966 = vlaneseq
        %v967 = vshrl.u32 %v966, 7
        %v968 = vsub.s32 0, %v967
        %v969 = vrot.slane %v964, %v968
        %v970 = vlaneseq
        %v971 = vshrl.u32 %v970, 7
        %v972 = vsub.s32 1, %v971
        %v973 = vrot.slane %v964, %v972
        %974 = vrot.lane.b32.xlu0 %v969, 2
        %v975 = vpop.permute.xlu0 %974
        %976 = vrot.lane.b32.xlu0 %v973, 2
        %v977 = vpop.permute.xlu0 %976
        %v978 = vsel %vm440, %v975, %v977
        %v982 = vmul.f32 %v961, %v975
        %v983 = vmul.f32 %v962, %v978
        %v984 = vmul.f32 %v963, %v977
        %v985 = vpack.c.bf16 %v982, %v982
        %v986 = vpack.c.bf16 %v983, %v983
        %v987 = vpack.c.bf16 %v984, %v984
        %v991 = vunpack.c.l.b16 %v985
        %v992 = vunpack.c.l.b16 %v986
        %v993 = vunpack.c.l.b16 %v987
        %v994 = vpack.c.b16 %v992, %v991
        %v995 = vpack.c.b16 %v993, %v993
        %996 = vrot.lane.b32.xlu0 %v994, 126
        %v997 = vpop.permute.xlu0 %996
        %998 = vrot.lane.b32.xlu0 %v995, 126
        %v999 = vpop.permute.xlu0 %998
        %v1000 = vrot.slane %v997, 4
        %v1001 = vrot.slane %v999, 4
        %v1002 = vsel %vm416, %v1000, %v1001
        %v1003 = vsel %vm466, %v997, %v1002
        %1005 = vst [vmem:[#allocation5 + $0x10] sm:$0xff] %v1003
        %v1006 = vld [vmem:[#allocation4] sm:$0xff]
        %v1007 = vld [vmem:[#allocation4 + $0x8] sm:$0xff]
        %v1008 = vld [vmem:[#allocation4 + $0x10] sm:$0xff]
        %v1009 = vld [vmem:[%s473] ss:$8 sm:$0x3]
        %v1011 = vlaneseq
        %v1012 = vshrl.u32 %v1011, 7
        %v1013 = vsub.s32 0, %v1012
        %v1014 = vrot.slane %v1009, %v1013
        %v1015 = vlaneseq
        %v1016 = vshrl.u32 %v1015, 7
        %v1017 = vsub.s32 1, %v1016
        %v1018 = vrot.slane %v1009, %v1017
        %1019 = vrot.lane.b32.xlu0 %v1014, 16
        %v1020 = vpop.permute.xlu0 %1019
        %1021 = vrot.lane.b32.xlu0 %v1018, 16
        %v1022 = vpop.permute.xlu0 %1021
        %v1023 = vsel %vm488, %v1020, %v1022
        %v1027 = vmul.f32 %v1006, %v1020
        %v1028 = vmul.f32 %v1007, %v1023
        %v1029 = vmul.f32 %v1008, %v1022
        %v1030 = vpack.c.bf16 %v1027, %v1027
        %v1031 = vpack.c.bf16 %v1028, %v1028
        %v1032 = vpack.c.bf16 %v1029, %v1029
        %v1036 = vunpack.c.l.b16 %v1030
        %v1037 = vunpack.c.l.b16 %v1031
        %v1038 = vunpack.c.l.b16 %v1032
        %v1039 = vpack.c.b16 %v1037, %v1036
        %v1040 = vpack.c.b16 %v1038, %v1038
        %1041 = vrot.lane.b32.xlu0 %v1039, 112
        %v1042 = vpop.permute.xlu0 %1041
        %1043 = vrot.lane.b32.xlu0 %v1040, 112
        %v1044 = vpop.permute.xlu0 %1043
        %v1045 = vrot.slane %v1042, 4
        %v1046 = vrot.slane %v1044, 4
        %v1047 = vsel %vm416, %v1045, %v1046
        %v1048 = vsel %vm514, %v1042, %v1047
        %1050 = vst [vmem:[#allocation5 + $0x18] sm:$0xff] %v1048
        %v1051 = vld [vmem:[#allocation4] sm:$0xff]
        %v1052 = vld [vmem:[#allocation4 + $0x8] sm:$0xff]
        %v1053 = vld [vmem:[#allocation4 + $0x10] sm:$0xff]
        %v1054 = vld [vmem:[%s521] ss:$8 sm:$0x3]
        %v1056 = vlaneseq
        %v1057 = vshrl.u32 %v1056, 7
        %v1058 = vsub.s32 0, %v1057
        %v1059 = vrot.slane %v1054, %v1058
        %v1060 = vlaneseq
        %v1061 = vshrl.u32 %v1060, 7
        %v1062 = vsub.s32 1, %v1061
        %v1063 = vrot.slane %v1054, %v1062
        %1064 = vrot.lane.b32.xlu0 %v1059, 17
        %v1065 = vpop.permute.xlu0 %1064
        %1066 = vrot.lane.b32.xlu0 %v1063, 17
        %v1067 = vpop.permute.xlu0 %1066
        %v1068 = vsel %vm339, %v1065, %v1067
        %v1072 = vmul.f32 %v1051, %v1065
        %v1073 = vmul.f32 %v1052, %v1068
        %v1074 = vmul.f32 %v1053, %v1067
        %v1075 = vpack.c.bf16 %v1072, %v1072
        %v1076 = vpack.c.bf16 %v1073, %v1073
        %v1077 = vpack.c.bf16 %v1074, %v1074
        %v1081 = vunpack.c.l.b16 %v1075
        %v1082 = vunpack.c.l.b16 %v1076
        %v1083 = vunpack.c.l.b16 %v1077
        %v1084 = vpack.c.b16 %v1082, %v1081
        %v1085 = vpack.c.b16 %v1083, %v1083
        %1086 = vrot.lane.b32.xlu0 %v1084, 111
        %v1087 = vpop.permute.xlu0 %1086
        %1088 = vrot.lane.b32.xlu0 %v1085, 111
        %v1089 = vpop.permute.xlu0 %1088
        %v1090 = vrot.slane %v1087, 4
        %v1091 = vrot.slane %v1089, 4
        %v1092 = vsel %vm416, %v1090, %v1091
        %v1093 = vsel %vm561, %v1087, %v1092
        %1095 = vst [vmem:[#allocation5 + $0x20] sm:$0xff] %v1093
        %v1096 = vld [vmem:[#allocation4] sm:$0xff]
        %v1097 = vld [vmem:[#allocation4 + $0x8] sm:$0xff]
        %v1098 = vld [vmem:[#allocation4 + $0x10] sm:$0xff]
        %v1099 = vld [vmem:[%s568] ss:$8 sm:$0x3]
        %v1101 = vlaneseq
        %v1102 = vshrl.u32 %v1101, 7
        %v1103 = vsub.s32 0, %v1102
        %v1104 = vrot.slane %v1099, %v1103
        %v1105 = vlaneseq
        %v1106 = vshrl.u32 %v1105, 7
        %v1107 = vsub.s32 1, %v1106
        %v1108 = vrot.slane %v1099, %v1107
        %1109 = vrot.lane.b32.xlu0 %v1104, 18
        %v1110 = vpop.permute.xlu0 %1109
        %1111 = vrot.lane.b32.xlu0 %v1108, 18
        %v1112 = vpop.permute.xlu0 %1111
        %v1113 = vsel %vm583, %v1110, %v1112
        %v1117 = vmul.f32 %v1096, %v1110
        %v1118 = vmul.f32 %v1097, %v1113
        %v1119 = vmul.f32 %v1098, %v1112
        %v1120 = vpack.c.bf16 %v1117, %v1117
        %v1121 = vpack.c.bf16 %v1118, %v1118
        %v1122 = vpack.c.bf16 %v1119, %v1119
        %v1126 = vunpack.c.l.b16 %v1120
        %v1127 = vunpack.c.l.b16 %v1121
        %v1128 = vunpack.c.l.b16 %v1122
        %v1129 = vpack.c.b16 %v1127, %v1126
        %v1130 = vpack.c.b16 %v1128, %v1128
        %1131 = vrot.lane.b32.xlu0 %v1129, 110
        %v1132 = vpop.permute.xlu0 %1131
        %1133 = vrot.lane.b32.xlu0 %v1130, 110
        %v1134 = vpop.permute.xlu0 %1133
        %v1135 = vrot.slane %v1132, 4
        %v1136 = vrot.slane %v1134, 4
        %v1137 = vsel %vm416, %v1135, %v1136
        %v1138 = vsel %vm609, %v1132, %v1137
        %1140 = vst [vmem:[#allocation5 + $0x28] sm:$0xff] %v1138
        %v1141 = vld [vmem:[#allocation4] sm:$0xff]
        %v1142 = vld [vmem:[#allocation4 + $0x8] sm:$0xff]
        %v1143 = vld [vmem:[#allocation4 + $0x10] sm:$0xff]
        %v1144 = vld [vmem:[%s616] ss:$8 sm:$0x3]
        %v1146 = vlaneseq
        %v1147 = vshrl.u32 %v1146, 7
        %v1148 = vsub.s32 0, %v1147
        %v1149 = vrot.slane %v1144, %v1148
        %v1150 = vlaneseq
        %v1151 = vshrl.u32 %v1150, 7
        %v1152 = vsub.s32 1, %v1151
        %v1153 = vrot.slane %v1144, %v1152
        %1154 = vrot.lane.b32.xlu0 %v1149, 32
        %v1155 = vpop.permute.xlu0 %1154
        %1156 = vrot.lane.b32.xlu0 %v1153, 32
        %v1157 = vpop.permute.xlu0 %1156
        %v1158 = vsel %vm631, %v1155, %v1157
        %v1162 = vmul.f32 %v1141, %v1155
        %v1163 = vmul.f32 %v1142, %v1158
        %v1164 = vmul.f32 %v1143, %v1157
        %v1165 = vpack.c.bf16 %v1162, %v1162
        %v1166 = vpack.c.bf16 %v1163, %v1163
        %v1167 = vpack.c.bf16 %v1164, %v1164
        %v1171 = vunpack.c.l.b16 %v1165
        %v1172 = vunpack.c.l.b16 %v1166
        %v1173 = vunpack.c.l.b16 %v1167
        %v1174 = vpack.c.b16 %v1172, %v1171
        %v1175 = vpack.c.b16 %v1173, %v1173
        %1176 = vrot.lane.b32.xlu0 %v1174, 96
        %v1177 = vpop.permute.xlu0 %1176
        %1178 = vrot.lane.b32.xlu0 %v1175, 96
        %v1179 = vpop.permute.xlu0 %1178
        %v1180 = vrot.slane %v1177, 4
        %v1181 = vrot.slane %v1179, 4
        %v1182 = vsel %vm416, %v1180, %v1181
        %v1183 = vsel %vm657, %v1177, %v1182
        %1185 = vst [vmem:[#allocation5 + $0x30] sm:$0xff] %v1183
        %v1186 = vld [vmem:[#allocation4] sm:$0xff]
        %v1187 = vld [vmem:[#allocation4 + $0x8] sm:$0xff]
        %v1188 = vld [vmem:[#allocation4 + $0x10] sm:$0xff]
        %v1189 = vld [vmem:[%s664] ss:$8 sm:$0x3]
        %v1191 = vlaneseq
        %v1192 = vshrl.u32 %v1191, 7
        %v1193 = vsub.s32 0, %v1192
        %v1194 = vrot.slane %v1189, %v1193
        %v1195 = vlaneseq
        %v1196 = vshrl.u32 %v1195, 7
        %v1197 = vsub.s32 1, %v1196
        %v1198 = vrot.slane %v1189, %v1197
        %1199 = vrot.lane.b32.xlu0 %v1194, 33
        %v1200 = vpop.permute.xlu0 %1199
        %1201 = vrot.lane.b32.xlu0 %v1198, 33
        %v1202 = vpop.permute.xlu0 %1201
        %v1203 = vsel %vm679, %v1200, %v1202
        %v1207 = vmul.f32 %v1186, %v1200
        %v1208 = vmul.f32 %v1187, %v1203
        %v1209 = vmul.f32 %v1188, %v1202
        %v1210 = vpack.c.bf16 %v1207, %v1207
        %v1211 = vpack.c.bf16 %v1208, %v1208
        %v1212 = vpack.c.bf16 %v1209, %v1209
        %v1216 = vunpack.c.l.b16 %v1210
        %v1217 = vunpack.c.l.b16 %v1211
        %v1218 = vunpack.c.l.b16 %v1212
        %v1219 = vpack.c.b16 %v1217, %v1216
        %v1220 = vpack.c.b16 %v1218, %v1218
        %1221 = vrot.lane.b32.xlu0 %v1219, 95
        %v1222 = vpop.permute.xlu0 %1221
        %1223 = vrot.lane.b32.xlu0 %v1220, 95
        %v1224 = vpop.permute.xlu0 %1223
        %v1225 = vrot.slane %v1222, 4
        %v1226 = vrot.slane %v1224, 4
        %v1227 = vsel %vm416, %v1225, %v1226
        %v1228 = vsel %vm705, %v1222, %v1227
        %1230 = vst [vmem:[#allocation5 + $0x38] sm:$0xff] %v1228
        %v1231 = vld [vmem:[#allocation4] sm:$0xff]
        %v1232 = vld [vmem:[#allocation4 + $0x8] sm:$0xff]
        %v1233 = vld [vmem:[#allocation4 + $0x10] sm:$0xff]
        %v1234 = vld [vmem:[%s712] ss:$8 sm:$0x3]
        %v1236 = vlaneseq
        %v1237 = vshrl.u32 %v1236, 7
        %v1238 = vsub.s32 0, %v1237
        %v1239 = vrot.slane %v1234, %v1238
        %v1240 = vlaneseq
        %v1241 = vshrl.u32 %v1240, 7
        %v1242 = vsub.s32 1, %v1241
        %v1243 = vrot.slane %v1234, %v1242
        %1244 = vrot.lane.b32.xlu0 %v1239, 34
        %v1245 = vpop.permute.xlu0 %1244
        %1246 = vrot.lane.b32.xlu0 %v1243, 34
        %v1247 = vpop.permute.xlu0 %1246
        %v1248 = vsel %vm326, %v1245, %v1247
        %v1252 = vmul.f32 %v1231, %v1245
        %v1253 = vmul.f32 %v1232, %v1248
        %v1254 = vmul.f32 %v1233, %v1247
        %v1255 = vpack.c.bf16 %v1252, %v1252
        %v1256 = vpack.c.bf16 %v1253, %v1253
        %v1257 = vpack.c.bf16 %v1254, %v1254
        %v1261 = vunpack.c.l.b16 %v1255
        %v1262 = vunpack.c.l.b16 %v1256
        %v1263 = vunpack.c.l.b16 %v1257
        %v1264 = vpack.c.b16 %v1262, %v1261
        %v1265 = vpack.c.b16 %v1263, %v1263
        %1266 = vrot.lane.b32.xlu0 %v1264, 94
        %v1267 = vpop.permute.xlu0 %1266
        %1268 = vrot.lane.b32.xlu0 %v1265, 94
        %v1269 = vpop.permute.xlu0 %1268
        %v1270 = vrot.slane %v1267, 4
        %v1271 = vrot.slane %v1269, 4
        %v1272 = vsel %vm416, %v1270, %v1271
        %v1273 = vsel %vm752, %v1267, %v1272
        %1275 = vst [vmem:[#allocation5 + $0x40] sm:$0xff] %v1273
        %v1276 = vld [vmem:[#allocation11] sm:$0xf]
        %v1277 = vld [vmem:[#allocation5] sm:$0xff]
        %v1278 = vld [vmem:[#allocation5 + $0x8] sm:$0xff]
        %v1279 = vld [vmem:[#allocation5 + $0x10] sm:$0xff]
        %v1280 = vld [vmem:[#allocation5 + $0x18] sm:$0xff]
        %v1281 = vld [vmem:[#allocation5 + $0x20] sm:$0xff]
        %v1282 = vld [vmem:[#allocation5 + $0x28] sm:$0xff]
        %v1283 = vld [vmem:[#allocation5 + $0x30] sm:$0xff]
        %v1284 = vld [vmem:[#allocation5 + $0x38] sm:$0xff]
        %v1285 = vld [vmem:[#allocation5 + $0x40] sm:$0xff]
        %v1295 = vunpack.c.l.b16 %v1277
        %v1296 = vunpack.c.h.b16 %v1277
        %v1297 = vunpack.c.l.b16 %v1278
        %v1298 = vunpack.c.h.b16 %v1278
        %v1299 = vunpack.c.l.b16 %v1279
        %v1300 = vunpack.c.h.b16 %v1279
        %v1301 = vunpack.c.l.b16 %v1280
        %v1302 = vunpack.c.h.b16 %v1280
        %v1303 = vunpack.c.l.b16 %v1281
        %v1304 = vunpack.c.h.b16 %v1281
        %v1305 = vunpack.c.l.b16 %v1282
        %v1306 = vunpack.c.h.b16 %v1282
        %v1307 = vunpack.c.l.b16 %v1283
        %v1308 = vunpack.c.h.b16 %v1283
        %v1309 = vunpack.c.l.b16 %v1284
        %v1310 = vunpack.c.h.b16 %v1284
        %v1311 = vunpack.c.l.b16 %v1285
        %v1312 = vunpack.c.h.b16 %v1285
        %v1313 = vpack.c.b16 %v1297, %v1295
        %v1314 = vpack.c.b16 %v1298, %v1296
        %v1315 = vpack.c.b16 %v1301, %v1299
        %v1316 = vpack.c.b16 %v1302, %v1300
        %v1317 = vpack.c.b16 %v1305, %v1303
        %v1318 = vpack.c.b16 %v1306, %v1304
        %v1319 = vpack.c.b16 %v1309, %v1307
        %v1320 = vpack.c.b16 %v1310, %v1308
        %v1321 = vpack.c.b16 %v1311, %v1311
        %v1322 = vpack.c.b16 %v1312, %v1312
        %v1332 = vsel %vm811, %v1276, 0
        %v1335 = vsel %vm815, %v1321, 0
        %v1338 = vsel %vm815, %v1322, 0
        %1340 = vmatprep.subr.bf16.mxu0 %v1314
        %1341 = vmatpush1.bf16.msra.mxu0 %v1313
        %1342 = vmatprep.subr.bf16.mxu0 %v1316
        %1343 = vmatpush1.bf16.msra.mxu0 %v1315
        %1344 = vmatprep.subr.bf16.mxu0 %v1318
        %1345 = vmatpush1.bf16.msra.mxu0 %v1317
        %1346 = vmatprep.subr.bf16.mxu0 %v1320
        %1347 = vmatpush1.bf16.msra.mxu0 %v1319
        %1348 = vmatprep.subr.bf16.mxu0 %v1338
        %1349 = vmatpush1.bf16.msra.mxu0 %v1335
        %1350 = vmatprep.subr.bf16.mxu0 0
        %1351 = vmatpush1.bf16.msra.mxu0 0
        %1352 = vmatprep.subr.bf16.mxu0 0
        %1353 = vmatpush1.bf16.msra.mxu0 0
        %1354 = vmatprep.subr.bf16.mxu0 0
        %1355 = vmatpush1.bf16.msra.mxu0 0
        %1356 = vmatprep.subr.bf16.mxu0 0
        %1357 = vmatpush1.bf16.msra.mxu0 0
        %1358 = vmatprep.subr.bf16.mxu0 0
        %1359 = vmatpush1.bf16.msra.mxu0 0
        %1360 = vmatprep.subr.bf16.mxu0 0
        %1361 = vmatpush1.bf16.msra.mxu0 0
        %1362 = vmatprep.subr.bf16.mxu0 0
        %1363 = vmatpush1.bf16.msra.mxu0 0
        %1364 = vmatprep.subr.bf16.mxu0 0
        %1365 = vmatpush1.bf16.msra.mxu0 0
        %1366 = vmatprep.subr.bf16.mxu0 0
        %1367 = vmatpush1.bf16.msra.mxu0 0
        %1368 = vmatprep.subr.bf16.mxu0 0
        %1369 = vmatpush1.bf16.msra.mxu0 0
        %1370 = vmatprep.subr.bf16.mxu0 0
        %1371 = vmatpush1.bf16.msra.mxu0 0
        %1372 = vmatprep.mubr.bf16.mxu0 0
        %1373 = vmatmul.mubr.bf16.gmra.mrb[0].mxu0 %v1332
        %v1374 = vpop.f32.mrb[0].mxu0
        %v1375 = vadd.f32 0.0, %v1374
        %v1376 = vpop.f32.mrb[0].mxu0
        %v1377 = vadd.f32 0.0, %v1376
        %v1378 = vpop.f32.mrb[0].mxu0
        %v1379 = vpop.f32.mrb[0].mxu0
        %1380 = vdwg.mxu0
        %1381 = vset.pattern.permute.xlu0 2
        %1382 = vperm.xlu0 %1381, %v321
        %v1383 = vpop.permute.xlu0 %1382
        %v1385 = vmul.f32 %v1375, %v1383
        %v1386 = vmul.f32 %v1377, %v1383
        %1387 = vset.pattern.permute.xlu0 3
        %1388 = vperm.xlu0 %1387, %v321
        %v1389 = vpop.permute.xlu0 %1388
        %v1391 = vadd.f32 %v1385, %v1389
        %v1392 = vadd.f32 %v1386, %v1389
        %v1393 = vmax.f32 %v1391, 0.0
        %v1394 = vmax.f32 %v1392, 0.0
        %v1395 = vadd.f32 %v1393, %v1394
        %1396 = vadd.xlane.f32.xlu0 %v1395
        %v1397 = vpop.xlane.xlu0 %1396
        %v1398 = vrcp.pop 256.0
        %v1399 = vmul.f32 %v1397, %v1398
        %v1400 = vmul.f32 %v322, %v1399
        %vm1401 = vcmask 31744
        %v1402 = vsel %vm1401, %v1400, 0.0
        %v1403 = vrot.slane %v1402, 4
        %v1404 = vadd.f32 %v1402, %v1403
        %v1405 = vrot.slane %v1404, 2
        %v1406 = vadd.f32 %v1404, %v1405
        %v1407 = vrot.slane %v1406, 1
        %v1408 = vadd.f32 %v1406, %v1407
        %v1409 = vadd.f32 %v1408, %v323
        %v1410 = vmax.f32 %v1409, 0.0
        %v1411 = vld [vmem:[%s6] sm:$0xff]
        %v1412 = vlaneseq
        %v1413 = vshrl.u32 %v1412, 7
        %v1414 = vsub.s32 0, %v1413
        %v1415 = vrot.slane %v1410, %v1414
        %v1416 = vmul.f32 %v1411, %v1415
        %v1417 = vsel %vm1401, %v1416, 0.0
        %1418 = vadd.xlane.f32.xlu0 %v1417
        %v1419 = vpop.xlane.xlu0 %1418
        %v1420 = vadd.f32 %v1419, %v321
        %v1421 = vsub.f32 0.0, %v1420
        %v1422 = vmul.f32 %v1421, 1.442695
        %v1423 = vpow.pop %v1422
        %v1424 = vadd.f32 %v1423, 1.0
        %v1425 = vrcp.pop %v1424
        %v1426 = vmul.f32 1.0, %v1425
        %1428 = vset.pattern.permute.xlu0 4
        %1429 = vperm.xlu0 %1428, %v1426
        %v1430 = vpop.permute.xlu0 %1429
        %v1432 = vmul.f32 %v1393, %v1430
        %v1433 = vmul.f32 %v1394, %v1430
        %v1434 = vadd.f32 %v1432, %v331
        %v1435 = vadd.f32 %v1433, %v332
        %v1436 = vmax.f32 %v1434, 0.0
        %v1437 = vmax.f32 %v1435, 0.0
        %1438 = vst [vmem:[%s319] sm:$0xff] %v1436
        %1439 = vst [vmem:[%s319 + $0x8] sm:$0xff] %v1437
        %s1440 = sand.u32 %s185, 1
        %s1441 = scalar_lea.sflag [#allocation8], %s1440
        %s1442 = sand.u32 %s185, 1
        %s1443 = smul.addr %s1442, 16
        %s1444 = scalar_lea.vmem [#allocation12], %s1443
        // Predicated region
        $region61: #{tpu_custom_call.1} parent=47 // pred_check
          %p1445 = pneg %p195
        $region62: #{tpu_custom_call.1} parent=47 // pred_check_branch
          %1447 = sbr.rel (%p1445) target = $region64
        $region63: #{tpu_custom_call.1} parent=47 // pred_region
          %s1449 = ssub.s32 256, 256
          %1450 = vsyncadd %s1441, %s1449
          %s1451 = smul.addr %s25, 2
          %s1452 = smul.addr %s1451, 128
          %s1453 = scalar_lea.hbm %s7, %s1452
          %s1455 = sshll.u32 %s1444, 4
          %s1456 = int_to_ptr.vmem [resolvable:$true] %s1455
          %1458 = dma.vmem_to_hbm [thread:$0]  %s1456, 256, %s1453, %s1441
        $region64: #{tpu_custom_call.1} parent=47 // pred_fallthru
          _
      $region48: #{tpu_custom_call.1} parent=5 // pred_fallthru
        _
      %p1459 = scmp.le.s32.totalorder 2, %s20
      // Predicated region
      $region65: #{tpu_custom_call.1} parent=5 // pred_check
        %p1460 = pneg %p1459
      $region66: #{tpu_custom_call.1} parent=5 // pred_check_branch
        %1462 = sbr.rel (%p1460) target = $region68
      $region67: #{tpu_custom_call.1} parent=5 // pred_region
        %s1463 = ssub.s32 %s20, 2
        // Predicated region
        $region69: #{tpu_custom_call.1} parent=67 // pred_check
          %p1464 = pneg %p201
        $region70: #{tpu_custom_call.1} parent=67 // pred_check_branch
          %1466 = sbr.rel (%p1464) target = $region72
        $region71: #{tpu_custom_call.1} parent=67 // pred_region
          %s1467 = sand.u32 %s186, 1
          %s1468 = scalar_lea.sflag [#allocation8], %s1467
          %s1469 = sand.u32 %s186, 1
          %s1470 = smul.addr %s1469, 16
          %s1471 = scalar_lea.vmem [#allocation12], %s1470
          %1472 = dma.done %s1468, 256
        $region72: #{tpu_custom_call.1} parent=67 // pred_fallthru
          _
      $region68: #{tpu_custom_call.1} parent=5 // pred_fallthru
        _
    $region6: #{tpu_custom_call.1} parent=1 // loop_footer
      %s24 = sadd.s32 1, %s20
    $region7: #{tpu_custom_call.1} parent=1 // loop_footer_branch
      %19 = sbr.rel target = $region3
    $region8: #{tpu_custom_call.1} parent=1 // loop_exit
      _
    %1473 = vsyncpa [#allocation7], 1
    %s1474 = scalar_lea.sflag [#allocation7], 1
    %1475 = vsyncpa %s1474, 1
    %1476 = vsyncpa [#allocation10], 1
    %1477 = vsyncpa [#allocation8], 1
    %s1478 = scalar_lea.sflag [#allocation8], 1
    %1479 = vsyncpa %s1478, 1

</llo_original>
